<compile_context>
chip_gen: v5e
topology: v5e:2x2
jax: 0.10.0
libtpu: 0.0.40
codegen_flags: <defaults>
</compile_context>

<pallas_src>
import jax
import jax.numpy as jnp
from jax import lax
from jax.experimental import pallas as pl
from jax.experimental.pallas import tpu as pltpu


def lstm_kernel(xg_ref, whh_ref, wl_ref, bl_ref, y_ref, h_sc, c_sc, hs_sc):
    """Single invocation: full LSTM recurrence + fused Linear/Sigmoid head.

    xg_ref : (T, B, 4H)  precomputed x @ W_ih^T + (b_ih + b_hh)
    whh_ref: (H, 4H)     W_hh^T
    wl_ref : (H, O)      W_lin^T
    bl_ref : (1, O)      b_lin
    y_ref  : (T, B, O)   output
    h_sc, c_sc : (B, H)  recurrent state (VMEM)
    hs_sc  : (T, B, H)   all hidden states, consumed by the head (VMEM)
    """
    T, B, fourH = xg_ref.shape
    H = fourH // 4
    O = y_ref.shape[-1]

    # Hoist loop-invariant loads out of the recurrence.
    whh = whh_ref[...]                                   # (H, 4H)
    h_sc[...] = jnp.zeros_like(h_sc)
    c_sc[...] = jnp.zeros_like(c_sc)

    def step(t, carry):
        # Only the hidden-state matmul sits on the serial critical path;
        # the x-projection and all biases were hoisted out of the recurrence.
        gates = xg_ref[t] + jnp.dot(h_sc[...], whh,
                                    preferred_element_type=jnp.float32)
        # PyTorch gate order [i, f, g, o].
        # TODO(synk): for production H (>=128) each gate slice is a full
        # lane-aligned slab; at 4H=128 these 32-lane slices cost a few XLU ops.
        i_g = jax.nn.sigmoid(gates[:, 0 * H:1 * H])
        f_g = jax.nn.sigmoid(gates[:, 1 * H:2 * H])
        g_g = jnp.tanh(gates[:, 2 * H:3 * H])
        o_g = jax.nn.sigmoid(gates[:, 3 * H:4 * H])

        c_new = f_g * c_sc[...] + i_g * g_g
        h_new = o_g * jnp.tanh(c_new)
        c_sc[...] = c_new
        h_sc[...] = h_new
        hs_sc[t] = h_new
        return carry

    lax.fori_loop(0, T, step, 0, unroll=True)

    # Linear + Sigmoid head, off the recurrent chain. Loop-invariant weight
    # load and bias broadcast hoisted out of the loop; the actual HBM store of
    # y is a single bulk DMA performed once at kernel end by Pallas.
    wl = wl_ref[...]                                     # (H, O)
    bl_b = jnp.broadcast_to(bl_ref[...], (B, O))         # hoisted broadcast

    def head(t, carry):
        y = jax.nn.sigmoid(
            jnp.dot(hs_sc[t], wl, preferred_element_type=jnp.float32) + bl_b)
        y_ref[t] = y.astype(y_ref.dtype)
        return carry

    lax.fori_loop(0, T, head, 0, unroll=True)


@jax.jit
def lstm_forward(x, w_ih, w_hh, b_ih, b_hh, w_lin, b_lin):
    """x: (T, B, I) float32. Returns (T, B, O). Matches torch LSTM+Linear+Sigmoid."""
    T, B, I = x.shape
    fourH = w_ih.shape[0]
    H = fourH // 4
    O = w_lin.shape[0]

    # Hoisted input projection for all time steps at once (one big matmul,
    # never on the kernel's serial recurrent chain), with both LSTM biases folded.
    xg = (jnp.einsum('tbi,gi->tbg', x, w_ih,
                     preferred_element_type=jnp.float32)
          + (b_ih + b_hh).reshape(1, 1, fourH)).astype(jnp.float32)   # (T, B, 4H)

    whh_t = jnp.transpose(w_hh)            # (H, 4H)
    wl_t = jnp.transpose(w_lin)            # (H, O)
    bl = b_lin.reshape(1, O)               # (1, O)

    vmem = pltpu.MemorySpace.VMEM
    return pl.pallas_call(
        lstm_kernel,
        out_shape=jax.ShapeDtypeStruct((T, B, O), x.dtype),
        in_specs=[
            pl.BlockSpec(memory_space=vmem),   # xg (T, B, 4H), fully resident
            pl.BlockSpec(memory_space=vmem),   # W_hh^T
            pl.BlockSpec(memory_space=vmem),   # W_lin^T
            pl.BlockSpec(memory_space=vmem),   # b_lin
        ],
        out_specs=pl.BlockSpec(memory_space=vmem),
        scratch_shapes=[
            pltpu.VMEM((B, H), jnp.float32),      # h state
            pltpu.VMEM((B, H), jnp.float32),      # c state
            pltpu.VMEM((T, B, H), jnp.float32),   # all h_t, for the fused head
        ],
    )(xg, whh_t, wl_t, bl)
    # TODO(synk): for large B, shard the batch across TensorCores (v7x) and use
    # bf16 weights (v6e/v7x); unnecessary at this demo size (B=2, H=32).


def lstm_reference(x, w_ih, w_hh, b_ih, b_hh, w_lin, b_lin):
    """Pure-JAX reference matching torch.nn.LSTM + Linear + Sigmoid."""
    T, B, I = x.shape
    H = w_hh.shape[1]

    def step(carry, x_t):
        h, c = carry
        gates = x_t @ w_ih.T + b_ih + h @ w_hh.T + b_hh
        i_g = jax.nn.sigmoid(gates[:, 0 * H:1 * H])
        f_g = jax.nn.sigmoid(gates[:, 1 * H:2 * H])
        g_g = jnp.tanh(gates[:, 2 * H:3 * H])
        o_g = jax.nn.sigmoid(gates[:, 3 * H:4 * H])
        c_new = f_g * c + i_g * g_g
        h_new = o_g * jnp.tanh(c_new)
        return (h_new, c_new), h_new

    h0 = jnp.zeros((B, H), jnp.float32)
    c0 = jnp.zeros((B, H), jnp.float32)
    _, hs = lax.scan(step, (h0, c0), x)
    return jax.nn.sigmoid(hs @ w_lin.T + b_lin)


if __name__ == "__main__":
    # Small shapes consistent with the module's forward pass.
    input_size, hidden_size, output_size = 16, 32, 8
    seq_len, batch = 8, 2

    key = jax.random.PRNGKey(0)
    ks = jax.random.split(key, 8)
    scale = 1.0 / jnp.sqrt(hidden_size)

    # Deterministic synthetic parameters (PyTorch-style uniform init range).
    w_ih = jax.random.uniform(ks[0], (4 * hidden_size, input_size),
                              jnp.float32, -scale, scale)
    w_hh = jax.random.uniform(ks[1], (4 * hidden_size, hidden_size),
                              jnp.float32, -scale, scale)
    b_ih = jax.random.uniform(ks[2], (4 * hidden_size,), jnp.float32, -scale, scale)
    b_hh = jax.random.uniform(ks[3], (4 * hidden_size,), jnp.float32, -scale, scale)
    w_lin = jax.random.uniform(ks[4], (output_size, hidden_size),
                               jnp.float32, -scale, scale)
    b_lin = jax.random.uniform(ks[5], (output_size,), jnp.float32, -scale, scale)

    x = jax.random.normal(ks[6], (seq_len, batch, input_size), jnp.float32)

    y = lstm_forward(x, w_ih, w_hh, b_ih, b_hh, w_lin, b_lin)
    y = jax.block_until_ready(y)

    y_ref = lstm_reference(x, w_ih, w_hh, b_ih, b_hh, w_lin, b_lin)
    assert y.shape == (seq_len, batch, output_size)
    assert jnp.allclose(y, y_ref, atol=1e-5, rtol=1e-5)

    print("KERNEL_OK")
</pallas_src>

<mosaic_0001>
module attributes {stable_mosaic.version = 11 : i64} {
  func.func @lstm_kernel(%arg0: memref<8x2x128xf32, #tpu.memory_space<vmem>>, %arg1: memref<32x128xf32, #tpu.memory_space<vmem>>, %arg2: memref<32x8xf32, #tpu.memory_space<vmem>>, %arg3: memref<1x8xf32, #tpu.memory_space<vmem>>, %arg4: memref<8x2x8xf32, #tpu.memory_space<vmem>>, %arg5: memref<2x32xf32, #tpu.memory_space<vmem>>, %arg6: memref<2x32xf32, #tpu.memory_space<vmem>>, %arg7: memref<8x2x32xf32, #tpu.memory_space<vmem>>) attributes {dimension_semantics = [], scalar_prefetch = 0 : i64, scratch_operands = 3 : i64, tpu.core_type = #tpu.core_type<tc>} {
    %c0 = arith.constant 0 : index
    %c0_0 = arith.constant 0 : index
    %0 = vector.load %arg1[%c0, %c0_0] : memref<32x128xf32, #tpu.memory_space<vmem>>, vector<32x128xf32>
    %cst = arith.constant 0.000000e+00 : f32
    %1 = vector.broadcast %cst : f32 to vector<2x32xf32>
    %c0_1 = arith.constant 0 : index
    %c0_2 = arith.constant 0 : index
    %2 = vector.load %arg5[%c0_1, %c0_2] : memref<2x32xf32, #tpu.memory_space<vmem>>, vector<2x32xf32>
    tpu.vector_store %arg5[%c0_1, %c0_2], %1 {strides = array<i32>} : memref<2x32xf32, #tpu.memory_space<vmem>>, vector<2x32xf32>,
    %cst_3 = arith.constant 0.000000e+00 : f32
    %3 = vector.broadcast %cst_3 : f32 to vector<2x32xf32>
    %c0_4 = arith.constant 0 : index
    %c0_5 = arith.constant 0 : index
    %4 = vector.load %arg6[%c0_4, %c0_5] : memref<2x32xf32, #tpu.memory_space<vmem>>, vector<2x32xf32>
    tpu.vector_store %arg6[%c0_4, %c0_5], %3 {strides = array<i32>} : memref<2x32xf32, #tpu.memory_space<vmem>>, vector<2x32xf32>,
    %c0_i32 = arith.constant 0 : i32
    %5 = arith.index_cast %c0_i32 : i32 to index
    %c0_6 = arith.constant 0 : index
    %c0_7 = arith.constant 0 : index
    %6 = vector.load %arg0[%5, %c0_6, %c0_7] : memref<8x2x128xf32, #tpu.memory_space<vmem>>, vector<1x2x128xf32>
    %7 = vector.shape_cast %6 : vector<1x2x128xf32> to vector<2x128xf32>
    %c0_8 = arith.constant 0 : index
    %c0_9 = arith.constant 0 : index
    %8 = vector.load %arg5[%c0_8, %c0_9] : memref<2x32xf32, #tpu.memory_space<vmem>>, vector<2x32xf32>
    %cst_10 = arith.constant dense<0.000000e+00> : vector<2x128xf32>
    %9 = tpu.matmul %8, %0, %cst_10 {dimension_numbers = #tpu.dot_dimension_numbers<[1], [0], [0], [1], [0, 0, 1, 1], [], []>} : vector<2x32xf32>, vector<32x128xf32>, vector<2x128xf32> -> vector<2x128xf32>
    %10 = arith.addf %7, %9 : vector<2x128xf32>
    %11 = vector.extract_strided_slice %10 {offsets = [0, 0], sizes = [2, 32], strides = [1, 1]} : vector<2x128xf32> to vector<2x32xf32>
    %12 = arith.negf %11 : vector<2x32xf32>
    %13 = math.exp %12 : vector<2x32xf32>
    %cst_11 = arith.constant 1.000000e+00 : f32
    %14 = vector.broadcast %cst_11 : f32 to vector<2x32xf32>
    %15 = arith.addf %14, %13 : vector<2x32xf32>
    %16 = arith.divf %14, %15 : vector<2x32xf32>
    %17 = vector.extract_strided_slice %10 {offsets = [0, 32], sizes = [2, 32], strides = [1, 1]} : vector<2x128xf32> to vector<2x32xf32>
    %18 = arith.negf %17 : vector<2x32xf32>
    %19 = math.exp %18 : vector<2x32xf32>
    %cst_12 = arith.constant 1.000000e+00 : f32
    %20 = vector.broadcast %cst_12 : f32 to vector<2x32xf32>
    %21 = arith.addf %20, %19 : vector<2x32xf32>
    %22 = arith.divf %20, %21 : vector<2x32xf32>
    %23 = vector.extract_strided_slice %10 {offsets = [0, 64], sizes = [2, 32], strides = [1, 1]} : vector<2x128xf32> to vector<2x32xf32>
    %24 = math.tanh %23 : vector<2x32xf32>
    %25 = vector.extract_strided_slice %10 {offsets = [0, 96], sizes = [2, 32], strides = [1, 1]} : vector<2x128xf32> to vector<2x32xf32>
    %26 = arith.negf %25 : vector<2x32xf32>
    %27 = math.exp %26 : vector<2x32xf32>
    %cst_13 = arith.constant 1.000000e+00 : f32
    %28 = vector.broadcast %cst_13 : f32 to vector<2x32xf32>
    %29 = arith.addf %28, %27 : vector<2x32xf32>
    %30 = arith.divf %28, %29 : vector<2x32xf32>
    %c0_14 = arith.constant 0 : index
    %c0_15 = arith.constant 0 : index
    %31 = vector.load %arg6[%c0_14, %c0_15] : memref<2x32xf32, #tpu.memory_space<vmem>>, vector<2x32xf32>
    %32 = arith.mulf %22, %31 : vector<2x32xf32>
    %33 = arith.mulf %16, %24 : vector<2x32xf32>
    %34 = arith.addf %32, %33 : vector<2x32xf32>
    %35 = math.tanh %34 : vector<2x32xf32>
    %36 = arith.mulf %30, %35 : vector<2x32xf32>
    %c0_16 = arith.constant 0 : index
    %c0_17 = arith.constant 0 : index
    %37 = vector.load %arg6[%c0_16, %c0_17] : memref<2x32xf32, #tpu.memory_space<vmem>>, vector<2x32xf32>
    tpu.vector_store %arg6[%c0_16, %c0_17], %34 {strides = array<i32>} : memref<2x32xf32, #tpu.memory_space<vmem>>, vector<2x32xf32>,
    %c0_18 = arith.constant 0 : index
    %c0_19 = arith.constant 0 : index
    %38 = vector.load %arg5[%c0_18, %c0_19] : memref<2x32xf32, #tpu.memory_space<vmem>>, vector<2x32xf32>
    tpu.vector_store %arg5[%c0_18, %c0_19], %36 {strides = array<i32>} : memref<2x32xf32, #tpu.memory_space<vmem>>, vector<2x32xf32>,
    %39 = arith.index_cast %c0_i32 : i32 to index
    %c0_20 = arith.constant 0 : index
    %c0_21 = arith.constant 0 : index
    %40 = vector.load %arg7[%39, %c0_20, %c0_21] : memref<8x2x32xf32, #tpu.memory_space<vmem>>, vector<1x2x32xf32>
    %41 = vector.shape_cast %40 : vector<1x2x32xf32> to vector<2x32xf32>
    %42 = vector.shape_cast %36 : vector<2x32xf32> to vector<1x2x32xf32>
    tpu.vector_store %arg7[%39, %c0_20, %c0_21], %42 {strides = array<i32>} : memref<8x2x32xf32, #tpu.memory_space<vmem>>, vector<1x2x32xf32>,
    %c1_i32 = arith.constant 1 : i32
    %43 = arith.index_cast %c1_i32 : i32 to index
    %c0_22 = arith.constant 0 : index
    %c0_23 = arith.constant 0 : index
    %44 = vector.load %arg0[%43, %c0_22, %c0_23] : memref<8x2x128xf32, #tpu.memory_space<vmem>>, vector<1x2x128xf32>
    %45 = vector.shape_cast %44 : vector<1x2x128xf32> to vector<2x128xf32>
    %c0_24 = arith.constant 0 : index
    %c0_25 = arith.constant 0 : index
    %46 = vector.load %arg5[%c0_24, %c0_25] : memref<2x32xf32, #tpu.memory_space<vmem>>, vector<2x32xf32>
    %cst_26 = arith.constant dense<0.000000e+00> : vector<2x128xf32>
    %47 = tpu.matmul %46, %0, %cst_26 {dimension_numbers = #tpu.dot_dimension_numbers<[1], [0], [0], [1], [0, 0, 1, 1], [], []>} : vector<2x32xf32>, vector<32x128xf32>, vector<2x128xf32> -> vector<2x128xf32>
    %48 = arith.addf %45, %47 : vector<2x128xf32>
    %49 = vector.extract_strided_slice %48 {offsets = [0, 0], sizes = [2, 32], strides = [1, 1]} : vector<2x128xf32> to vector<2x32xf32>
    %50 = arith.negf %49 : vector<2x32xf32>
    %51 = math.exp %50 : vector<2x32xf32>
    %cst_27 = arith.constant 1.000000e+00 : f32
    %52 = vector.broadcast %cst_27 : f32 to vector<2x32xf32>
    %53 = arith.addf %52, %51 : vector<2x32xf32>
    %54 = arith.divf %52, %53 : vector<2x32xf32>
    %55 = vector.extract_strided_slice %48 {offsets = [0, 32], sizes = [2, 32], strides = [1, 1]} : vector<2x128xf32> to vector<2x32xf32>
    %56 = arith.negf %55 : vector<2x32xf32>
    %57 = math.exp %56 : vector<2x32xf32>
    %cst_28 = arith.constant 1.000000e+00 : f32
    %58 = vector.broadcast %cst_28 : f32 to vector<2x32xf32>
    %59 = arith.addf %58, %57 : vector<2x32xf32>
    %60 = arith.divf %58, %59 : vector<2x32xf32>
    %61 = vector.extract_strided_slice %48 {offsets = [0, 64], sizes = [2, 32], strides = [1, 1]} : vector<2x128xf32> to vector<2x32xf32>
    %62 = math.tanh %61 : vector<2x32xf32>
    %63 = vector.extract_strided_slice %48 {offsets = [0, 96], sizes = [2, 32], strides = [1, 1]} : vector<2x128xf32> to vector<2x32xf32>
    %64 = arith.negf %63 : vector<2x32xf32>
    %65 = math.exp %64 : vector<2x32xf32>
    %cst_29 = arith.constant 1.000000e+00 : f32
    %66 = vector.broadcast %cst_29 : f32 to vector<2x32xf32>
    %67 = arith.addf %66, %65 : vector<2x32xf32>
    %68 = arith.divf %66, %67 : vector<2x32xf32>
    %c0_30 = arith.constant 0 : index
    %c0_31 = arith.constant 0 : index
    %69 = vector.load %arg6[%c0_30, %c0_31] : memref<2x32xf32, #tpu.memory_space<vmem>>, vector<2x32xf32>
    %70 = arith.mulf %60, %69 : vector<2x32xf32>
    %71 = arith.mulf %54, %62 : vector<2x32xf32>
    %72 = arith.addf %70, %71 : vector<2x32xf32>
    %73 = math.tanh %72 : vector<2x32xf32>
    %74 = arith.mulf %68, %73 : vector<2x32xf32>
    %c0_32 = arith.constant 0 : index
    %c0_33 = arith.constant 0 : index
    %75 = vector.load %arg6[%c0_32, %c0_33] : memref<2x32xf32, #tpu.memory_space<vmem>>, vector<2x32xf32>
    tpu.vector_store %arg6[%c0_32, %c0_33], %72 {strides = array<i32>} : memref<2x32xf32, #tpu.memory_space<vmem>>, vector<2x32xf32>,
    %c0_34 = arith.constant 0 : index
    %c0_35 = arith.constant 0 : index
    %76 = vector.load %arg5[%c0_34, %c0_35] : memref<2x32xf32, #tpu.memory_space<vmem>>, vector<2x32xf32>
    tpu.vector_store %arg5[%c0_34, %c0_35], %74 {strides = array<i32>} : memref<2x32xf32, #tpu.memory_space<vmem>>, vector<2x32xf32>,
    %77 = arith.index_cast %c1_i32 : i32 to index
    %c0_36 = arith.constant 0 : index
    %c0_37 = arith.constant 0 : index
    %78 = vector.load %arg7[%77, %c0_36, %c0_37] : memref<8x2x32xf32, #tpu.memory_space<vmem>>, vector<1x2x32xf32>
    %79 = vector.shape_cast %78 : vector<1x2x32xf32> to vector<2x32xf32>
    %80 = vector.shape_cast %74 : vector<2x32xf32> to vector<1x2x32xf32>
    tpu.vector_store %arg7[%77, %c0_36, %c0_37], %80 {strides = array<i32>} : memref<8x2x32xf32, #tpu.memory_space<vmem>>, vector<1x2x32xf32>,
    %c2_i32 = arith.constant 2 : i32
    %81 = arith.index_cast %c2_i32 : i32 to index
    %c0_38 = arith.constant 0 : index
    %c0_39 = arith.constant 0 : index
    %82 = vector.load %arg0[%81, %c0_38, %c0_39] : memref<8x2x128xf32, #tpu.memory_space<vmem>>, vector<1x2x128xf32>
    %83 = vector.shape_cast %82 : vector<1x2x128xf32> to vector<2x128xf32>
    %c0_40 = arith.constant 0 : index
    %c0_41 = arith.constant 0 : index
    %84 = vector.load %arg5[%c0_40, %c0_41] : memref<2x32xf32, #tpu.memory_space<vmem>>, vector<2x32xf32>
    %cst_42 = arith.constant dense<0.000000e+00> : vector<2x128xf32>
    %85 = tpu.matmul %84, %0, %cst_42 {dimension_numbers = #tpu.dot_dimension_numbers<[1], [0], [0], [1], [0, 0, 1, 1], [], []>} : vector<2x32xf32>, vector<32x128xf32>, vector<2x128xf32> -> vector<2x128xf32>
    %86 = arith.addf %83, %85 : vector<2x128xf32>
    %87 = vector.extract_strided_slice %86 {offsets = [0, 0], sizes = [2, 32], strides = [1, 1]} : vector<2x128xf32> to vector<2x32xf32>
    %88 = arith.negf %87 : vector<2x32xf32>
    %89 = math.exp %88 : vector<2x32xf32>
    %cst_43 = arith.constant 1.000000e+00 : f32
    %90 = vector.broadcast %cst_43 : f32 to vector<2x32xf32>
    %91 = arith.addf %90, %89 : vector<2x32xf32>
    %92 = arith.divf %90, %91 : vector<2x32xf32>
    %93 = vector.extract_strided_slice %86 {offsets = [0, 32], sizes = [2, 32], strides = [1, 1]} : vector<2x128xf32> to vector<2x32xf32>
    %94 = arith.negf %93 : vector<2x32xf32>
    %95 = math.exp %94 : vector<2x32xf32>
    %cst_44 = arith.constant 1.000000e+00 : f32
    %96 = vector.broadcast %cst_44 : f32 to vector<2x32xf32>
    %97 = arith.addf %96, %95 : vector<2x32xf32>
    %98 = arith.divf %96, %97 : vector<2x32xf32>
    %99 = vector.extract_strided_slice %86 {offsets = [0, 64], sizes = [2, 32], strides = [1, 1]} : vector<2x128xf32> to vector<2x32xf32>
    %100 = math.tanh %99 : vector<2x32xf32>
    %101 = vector.extract_strided_slice %86 {offsets = [0, 96], sizes = [2, 32], strides = [1, 1]} : vector<2x128xf32> to vector<2x32xf32>
    %102 = arith.negf %101 : vector<2x32xf32>
    %103 = math.exp %102 : vector<2x32xf32>
    %cst_45 = arith.constant 1.000000e+00 : f32
    %104 = vector.broadcast %cst_45 : f32 to vector<2x32xf32>
    %105 = arith.addf %104, %103 : vector<2x32xf32>
    %106 = arith.divf %104, %105 : vector<2x32xf32>
    %c0_46 = arith.constant 0 : index
    %c0_47 = arith.constant 0 : index
    %107 = vector.load %arg6[%c0_46, %c0_47] : memref<2x32xf32, #tpu.memory_space<vmem>>, vector<2x32xf32>
    %108 = arith.mulf %98, %107 : vector<2x32xf32>
    %109 = arith.mulf %92, %100 : vector<2x32xf32>
    %110 = arith.addf %108, %109 : vector<2x32xf32>
    %111 = math.tanh %110 : vector<2x32xf32>
    %112 = arith.mulf %106, %111 : vector<2x32xf32>
    %c0_48 = arith.constant 0 : index
    %c0_49 = arith.constant 0 : index
    %113 = vector.load %arg6[%c0_48, %c0_49] : memref<2x32xf32, #tpu.memory_space<vmem>>, vector<2x32xf32>
    tpu.vector_store %arg6[%c0_48, %c0_49], %110 {strides = array<i32>} : memref<2x32xf32, #tpu.memory_space<vmem>>, vector<2x32xf32>,
    %c0_50 = arith.constant 0 : index
    %c0_51 = arith.constant 0 : index
    %114 = vector.load %arg5[%c0_50, %c0_51] : memref<2x32xf32, #tpu.memory_space<vmem>>, vector<2x32xf32>
    tpu.vector_store %arg5[%c0_50, %c0_51], %112 {strides = array<i32>} : memref<2x32xf32, #tpu.memory_space<vmem>>, vector<2x32xf32>,
    %115 = arith.index_cast %c2_i32 : i32 to index
    %c0_52 = arith.constant 0 : index
    %c0_53 = arith.constant 0 : index
    %116 = vector.load %arg7[%115, %c0_52, %c0_53] : memref<8x2x32xf32, #tpu.memory_space<vmem>>, vector<1x2x32xf32>
    %117 = vector.shape_cast %116 : vector<1x2x32xf32> to vector<2x32xf32>
    %118 = vector.shape_cast %112 : vector<2x32xf32> to vector<1x2x32xf32>
    tpu.vector_store %arg7[%115, %c0_52, %c0_53], %118 {strides = array<i32>} : memref<8x2x32xf32, #tpu.memory_space<vmem>>, vector<1x2x32xf32>,
    %c3_i32 = arith.constant 3 : i32
    %119 = arith.index_cast %c3_i32 : i32 to index
    %c0_54 = arith.constant 0 : index
    %c0_55 = arith.constant 0 : index
    %120 = vector.load %arg0[%119, %c0_54, %c0_55] : memref<8x2x128xf32, #tpu.memory_space<vmem>>, vector<1x2x128xf32>
    %121 = vector.shape_cast %120 : vector<1x2x128xf32> to vector<2x128xf32>
    %c0_56 = arith.constant 0 : index
    %c0_57 = arith.constant 0 : index
    %122 = vector.load %arg5[%c0_56, %c0_57] : memref<2x32xf32, #tpu.memory_space<vmem>>, vector<2x32xf32>
    %cst_58 = arith.constant dense<0.000000e+00> : vector<2x128xf32>
    %123 = tpu.matmul %122, %0, %cst_58 {dimension_numbers = #tpu.dot_dimension_numbers<[1], [0], [0], [1], [0, 0, 1, 1], [], []>} : vector<2x32xf32>, vector<32x128xf32>, vector<2x128xf32> -> vector<2x128xf32>
    %124 = arith.addf %121, %123 : vector<2x128xf32>
    %125 = vector.extract_strided_slice %124 {offsets = [0, 0], sizes = [2, 32], strides = [1, 1]} : vector<2x128xf32> to vector<2x32xf32>
    %126 = arith.negf %125 : vector<2x32xf32>
    %127 = math.exp %126 : vector<2x32xf32>
    %cst_59 = arith.constant 1.000000e+00 : f32
    %128 = vector.broadcast %cst_59 : f32 to vector<2x32xf32>
    %129 = arith.addf %128, %127 : vector<2x32xf32>
    %130 = arith.divf %128, %129 : vector<2x32xf32>
    %131 = vector.extract_strided_slice %124 {offsets = [0, 32], sizes = [2, 32], strides = [1, 1]} : vector<2x128xf32> to vector<2x32xf32>
    %132 = arith.negf %131 : vector<2x32xf32>
    %133 = math.exp %132 : vector<2x32xf32>
    %cst_60 = arith.constant 1.000000e+00 : f32
    %134 = vector.broadcast %cst_60 : f32 to vector<2x32xf32>
    %135 = arith.addf %134, %133 : vector<2x32xf32>
    %136 = arith.divf %134, %135 : vector<2x32xf32>
    %137 = vector.extract_strided_slice %124 {offsets = [0, 64], sizes = [2, 32], strides = [1, 1]} : vector<2x128xf32> to vector<2x32xf32>
    %138 = math.tanh %137 : vector<2x32xf32>
    %139 = vector.extract_strided_slice %124 {offsets = [0, 96], sizes = [2, 32], strides = [1, 1]} : vector<2x128xf32> to vector<2x32xf32>
    %140 = arith.negf %139 : vector<2x32xf32>
    %141 = math.exp %140 : vector<2x32xf32>
    %cst_61 = arith.constant 1.000000e+00 : f32
    %142 = vector.broadcast %cst_61 : f32 to vector<2x32xf32>
    %143 = arith.addf %142, %141 : vector<2x32xf32>
    %144 = arith.divf %142, %143 : vector<2x32xf32>
    %c0_62 = arith.constant 0 : index
    %c0_63 = arith.constant 0 : index
    %145 = vector.load %arg6[%c0_62, %c0_63] : memref<2x32xf32, #tpu.memory_space<vmem>>, vector<2x32xf32>
    %146 = arith.mulf %136, %145 : vector<2x32xf32>
    %147 = arith.mulf %130, %138 : vector<2x32xf32>
    %148 = arith.addf %146, %147 : vector<2x32xf32>
    %149 = math.tanh %148 : vector<2x32xf32>
    %150 = arith.mulf %144, %149 : vector<2x32xf32>
    %c0_64 = arith.constant 0 : index
    %c0_65 = arith.constant 0 : index
    %151 = vector.load %arg6[%c0_64, %c0_65] : memref<2x32xf32, #tpu.memory_space<vmem>>, vector<2x32xf32>
    tpu.vector_store %arg6[%c0_64, %c0_65], %148 {strides = array<i32>} : memref<2x32xf32, #tpu.memory_space<vmem>>, vector<2x32xf32>,
    %c0_66 = arith.constant 0 : index
    %c0_67 = arith.constant 0 : index
    %152 = vector.load %arg5[%c0_66, %c0_67] : memref<2x32xf32, #tpu.memory_space<vmem>>, vector<2x32xf32>
    tpu.vector_store %arg5[%c0_66, %c0_67], %150 {strides = array<i32>} : memref<2x32xf32, #tpu.memory_space<vmem>>, vector<2x32xf32>,
    %153 = arith.index_cast %c3_i32 : i32 to index
    %c0_68 = arith.constant 0 : index
    %c0_69 = arith.constant 0 : index
    %154 = vector.load %arg7[%153, %c0_68, %c0_69] : memref<8x2x32xf32, #tpu.memory_space<vmem>>, vector<1x2x32xf32>
    %155 = vector.shape_cast %154 : vector<1x2x32xf32> to vector<2x32xf32>
    %156 = vector.shape_cast %150 : vector<2x32xf32> to vector<1x2x32xf32>
    tpu.vector_store %arg7[%153, %c0_68, %c0_69], %156 {strides = array<i32>} : memref<8x2x32xf32, #tpu.memory_space<vmem>>, vector<1x2x32xf32>,
    %c4_i32 = arith.constant 4 : i32
    %157 = arith.index_cast %c4_i32 : i32 to index
    %c0_70 = arith.constant 0 : index
    %c0_71 = arith.constant 0 : index
    %158 = vector.load %arg0[%157, %c0_70, %c0_71] : memref<8x2x128xf32, #tpu.memory_space<vmem>>, vector<1x2x128xf32>
    %159 = vector.shape_cast %158 : vector<1x2x128xf32> to vector<2x128xf32>
    %c0_72 = arith.constant 0 : index
    %c0_73 = arith.constant 0 : index
    %160 = vector.load %arg5[%c0_72, %c0_73] : memref<2x32xf32, #tpu.memory_space<vmem>>, vector<2x32xf32>
    %cst_74 = arith.constant dense<0.000000e+00> : vector<2x128xf32>
    %161 = tpu.matmul %160, %0, %cst_74 {dimension_numbers = #tpu.dot_dimension_numbers<[1], [0], [0], [1], [0, 0, 1, 1], [], []>} : vector<2x32xf32>, vector<32x128xf32>, vector<2x128xf32> -> vector<2x128xf32>
    %162 = arith.addf %159, %161 : vector<2x128xf32>
    %163 = vector.extract_strided_slice %162 {offsets = [0, 0], sizes = [2, 32], strides = [1, 1]} : vector<2x128xf32> to vector<2x32xf32>
    %164 = arith.negf %163 : vector<2x32xf32>
    %165 = math.exp %164 : vector<2x32xf32>
    %cst_75 = arith.constant 1.000000e+00 : f32
    %166 = vector.broadcast %cst_75 : f32 to vector<2x32xf32>
    %167 = arith.addf %166, %165 : vector<2x32xf32>
    %168 = arith.divf %166, %167 : vector<2x32xf32>
    %169 = vector.extract_strided_slice %162 {offsets = [0, 32], sizes = [2, 32], strides = [1, 1]} : vector<2x128xf32> to vector<2x32xf32>
    %170 = arith.negf %169 : vector<2x32xf32>
    %171 = math.exp %170 : vector<2x32xf32>
    %cst_76 = arith.constant 1.000000e+00 : f32
    %172 = vector.broadcast %cst_76 : f32 to vector<2x32xf32>
    %173 = arith.addf %172, %171 : vector<2x32xf32>
    %174 = arith.divf %172, %173 : vector<2x32xf32>
    %175 = vector.extract_strided_slice %162 {offsets = [0, 64], sizes = [2, 32], strides = [1, 1]} : vector<2x128xf32> to vector<2x32xf32>
    %176 = math.tanh %175 : vector<2x32xf32>
    %177 = vector.extract_strided_slice %162 {offsets = [0, 96], sizes = [2, 32], strides = [1, 1]} : vector<2x128xf32> to vector<2x32xf32>
    %178 = arith.negf %177 : vector<2x32xf32>
    %179 = math.exp %178 : vector<2x32xf32>
    %cst_77 = arith.constant 1.000000e+00 : f32
    %180 = vector.broadcast %cst_77 : f32 to vector<2x32xf32>
    %181 = arith.addf %180, %179 : vector<2x32xf32>
    %182 = arith.divf %180, %181 : vector<2x32xf32>
    %c0_78 = arith.constant 0 : index
    %c0_79 = arith.constant 0 : index
    %183 = vector.load %arg6[%c0_78, %c0_79] : memref<2x32xf32, #tpu.memory_space<vmem>>, vector<2x32xf32>
    %184 = arith.mulf %174, %183 : vector<2x32xf32>
    %185 = arith.mulf %168, %176 : vector<2x32xf32>
    %186 = arith.addf %184, %185 : vector<2x32xf32>
    %187 = math.tanh %186 : vector<2x32xf32>
    %188 = arith.mulf %182, %187 : vector<2x32xf32>
    %c0_80 = arith.constant 0 : index
    %c0_81 = arith.constant 0 : index
    %189 = vector.load %arg6[%c0_80, %c0_81] : memref<2x32xf32, #tpu.memory_space<vmem>>, vector<2x32xf32>
    tpu.vector_store %arg6[%c0_80, %c0_81], %186 {strides = array<i32>} : memref<2x32xf32, #tpu.memory_space<vmem>>, vector<2x32xf32>,
    %c0_82 = arith.constant 0 : index
    %c0_83 = arith.constant 0 : index
    %190 = vector.load %arg5[%c0_82, %c0_83] : memref<2x32xf32, #tpu.memory_space<vmem>>, vector<2x32xf32>
    tpu.vector_store %arg5[%c0_82, %c0_83], %188 {strides = array<i32>} : memref<2x32xf32, #tpu.memory_space<vmem>>, vector<2x32xf32>,
    %191 = arith.index_cast %c4_i32 : i32 to index
    %c0_84 = arith.constant 0 : index
    %c0_85 = arith.constant 0 : index
    %192 = vector.load %arg7[%191, %c0_84, %c0_85] : memref<8x2x32xf32, #tpu.memory_space<vmem>>, vector<1x2x32xf32>
    %193 = vector.shape_cast %192 : vector<1x2x32xf32> to vector<2x32xf32>
    %194 = vector.shape_cast %188 : vector<2x32xf32> to vector<1x2x32xf32>
    tpu.vector_store %arg7[%191, %c0_84, %c0_85], %194 {strides = array<i32>} : memref<8x2x32xf32, #tpu.memory_space<vmem>>, vector<1x2x32xf32>,
    %c5_i32 = arith.constant 5 : i32
    %195 = arith.index_cast %c5_i32 : i32 to index
    %c0_86 = arith.constant 0 : index
    %c0_87 = arith.constant 0 : index
    %196 = vector.load %arg0[%195, %c0_86, %c0_87] : memref<8x2x128xf32, #tpu.memory_space<vmem>>, vector<1x2x128xf32>
    %197 = vector.shape_cast %196 : vector<1x2x128xf32> to vector<2x128xf32>
    %c0_88 = arith.constant 0 : index
    %c0_89 = arith.constant 0 : index
    %198 = vector.load %arg5[%c0_88, %c0_89] : memref<2x32xf32, #tpu.memory_space<vmem>>, vector<2x32xf32>
    %cst_90 = arith.constant dense<0.000000e+00> : vector<2x128xf32>
    %199 = tpu.matmul %198, %0, %cst_90 {dimension_numbers = #tpu.dot_dimension_numbers<[1], [0], [0], [1], [0, 0, 1, 1], [], []>} : vector<2x32xf32>, vector<32x128xf32>, vector<2x128xf32> -> vector<2x128xf32>
    %200 = arith.addf %197, %199 : vector<2x128xf32>
    %201 = vector.extract_strided_slice %200 {offsets = [0, 0], sizes = [2, 32], strides = [1, 1]} : vector<2x128xf32> to vector<2x32xf32>
    %202 = arith.negf %201 : vector<2x32xf32>
    %203 = math.exp %202 : vector<2x32xf32>
    %cst_91 = arith.constant 1.000000e+00 : f32
    %204 = vector.broadcast %cst_91 : f32 to vector<2x32xf32>
    %205 = arith.addf %204, %203 : vector<2x32xf32>
    %206 = arith.divf %204, %205 : vector<2x32xf32>
    %207 = vector.extract_strided_slice %200 {offsets = [0, 32], sizes = [2, 32], strides = [1, 1]} : vector<2x128xf32> to vector<2x32xf32>
    %208 = arith.negf %207 : vector<2x32xf32>
    %209 = math.exp %208 : vector<2x32xf32>
    %cst_92 = arith.constant 1.000000e+00 : f32
    %210 = vector.broadcast %cst_92 : f32 to vector<2x32xf32>
    %211 = arith.addf %210, %209 : vector<2x32xf32>
    %212 = arith.divf %210, %211 : vector<2x32xf32>
    %213 = vector.extract_strided_slice %200 {offsets = [0, 64], sizes = [2, 32], strides = [1, 1]} : vector<2x128xf32> to vector<2x32xf32>
    %214 = math.tanh %213 : vector<2x32xf32>
    %215 = vector.extract_strided_slice %200 {offsets = [0, 96], sizes = [2, 32], strides = [1, 1]} : vector<2x128xf32> to vector<2x32xf32>
    %216 = arith.negf %215 : vector<2x32xf32>
    %217 = math.exp %216 : vector<2x32xf32>
    %cst_93 = arith.constant 1.000000e+00 : f32
    %218 = vector.broadcast %cst_93 : f32 to vector<2x32xf32>
    %219 = arith.addf %218, %217 : vector<2x32xf32>
    %220 = arith.divf %218, %219 : vector<2x32xf32>
    %c0_94 = arith.constant 0 : index
    %c0_95 = arith.constant 0 : index
    %221 = vector.load %arg6[%c0_94, %c0_95] : memref<2x32xf32, #tpu.memory_space<vmem>>, vector<2x32xf32>
    %222 = arith.mulf %212, %221 : vector<2x32xf32>
    %223 = arith.mulf %206, %214 : vector<2x32xf32>
    %224 = arith.addf %222, %223 : vector<2x32xf32>
    %225 = math.tanh %224 : vector<2x32xf32>
    %226 = arith.mulf %220, %225 : vector<2x32xf32>
    %c0_96 = arith.constant 0 : index
    %c0_97 = arith.constant 0 : index
    %227 = vector.load %arg6[%c0_96, %c0_97] : memref<2x32xf32, #tpu.memory_space<vmem>>, vector<2x32xf32>
    tpu.vector_store %arg6[%c0_96, %c0_97], %224 {strides = array<i32>} : memref<2x32xf32, #tpu.memory_space<vmem>>, vector<2x32xf32>,
    %c0_98 = arith.constant 0 : index
    %c0_99 = arith.constant 0 : index
    %228 = vector.load %arg5[%c0_98, %c0_99] : memref<2x32xf32, #tpu.memory_space<vmem>>, vector<2x32xf32>
    tpu.vector_store %arg5[%c0_98, %c0_99], %226 {strides = array<i32>} : memref<2x32xf32, #tpu.memory_space<vmem>>, vector<2x32xf32>,
    %229 = arith.index_cast %c5_i32 : i32 to index
    %c0_100 = arith.constant 0 : index
    %c0_101 = arith.constant 0 : index
    %230 = vector.load %arg7[%229, %c0_100, %c0_101] : memref<8x2x32xf32, #tpu.memory_space<vmem>>, vector<1x2x32xf32>
    %231 = vector.shape_cast %230 : vector<1x2x32xf32> to vector<2x32xf32>
    %232 = vector.shape_cast %226 : vector<2x32xf32> to vector<1x2x32xf32>
    tpu.vector_store %arg7[%229, %c0_100, %c0_101], %232 {strides = array<i32>} : memref<8x2x32xf32, #tpu.memory_space<vmem>>, vector<1x2x32xf32>,
    %c6_i32 = arith.constant 6 : i32
    %233 = arith.index_cast %c6_i32 : i32 to index
    %c0_102 = arith.constant 0 : index
    %c0_103 = arith.constant 0 : index
    %234 = vector.load %arg0[%233, %c0_102, %c0_103] : memref<8x2x128xf32, #tpu.memory_space<vmem>>, vector<1x2x128xf32>
    %235 = vector.shape_cast %234 : vector<1x2x128xf32> to vector<2x128xf32>
    %c0_104 = arith.constant 0 : index
    %c0_105 = arith.constant 0 : index
    %236 = vector.load %arg5[%c0_104, %c0_105] : memref<2x32xf32, #tpu.memory_space<vmem>>, vector<2x32xf32>
    %cst_106 = arith.constant dense<0.000000e+00> : vector<2x128xf32>
    %237 = tpu.matmul %236, %0, %cst_106 {dimension_numbers = #tpu.dot_dimension_numbers<[1], [0], [0], [1], [0, 0, 1, 1], [], []>} : vector<2x32xf32>, vector<32x128xf32>, vector<2x128xf32> -> vector<2x128xf32>
    %238 = arith.addf %235, %237 : vector<2x128xf32>
    %239 = vector.extract_strided_slice %238 {offsets = [0, 0], sizes = [2, 32], strides = [1, 1]} : vector<2x128xf32> to vector<2x32xf32>
    %240 = arith.negf %239 : vector<2x32xf32>
    %241 = math.exp %240 : vector<2x32xf32>
    %cst_107 = arith.constant 1.000000e+00 : f32
    %242 = vector.broadcast %cst_107 : f32 to vector<2x32xf32>
    %243 = arith.addf %242, %241 : vector<2x32xf32>
    %244 = arith.divf %242, %243 : vector<2x32xf32>
    %245 = vector.extract_strided_slice %238 {offsets = [0, 32], sizes = [2, 32], strides = [1, 1]} : vector<2x128xf32> to vector<2x32xf32>
    %246 = arith.negf %245 : vector<2x32xf32>
    %247 = math.exp %246 : vector<2x32xf32>
    %cst_108 = arith.constant 1.000000e+00 : f32
    %248 = vector.broadcast %cst_108 : f32 to vector<2x32xf32>
    %249 = arith.addf %248, %247 : vector<2x32xf32>
    %250 = arith.divf %248, %249 : vector<2x32xf32>
    %251 = vector.extract_strided_slice %238 {offsets = [0, 64], sizes = [2, 32], strides = [1, 1]} : vector<2x128xf32> to vector<2x32xf32>
    %252 = math.tanh %251 : vector<2x32xf32>
    %253 = vector.extract_strided_slice %238 {offsets = [0, 96], sizes = [2, 32], strides = [1, 1]} : vector<2x128xf32> to vector<2x32xf32>
    %254 = arith.negf %253 : vector<2x32xf32>
    %255 = math.exp %254 : vector<2x32xf32>
    %cst_109 = arith.constant 1.000000e+00 : f32
    %256 = vector.broadcast %cst_109 : f32 to vector<2x32xf32>
    %257 = arith.addf %256, %255 : vector<2x32xf32>
    %258 = arith.divf %256, %257 : vector<2x32xf32>
    %c0_110 = arith.constant 0 : index
    %c0_111 = arith.constant 0 : index
    %259 = vector.load %arg6[%c0_110, %c0_111] : memref<2x32xf32, #tpu.memory_space<vmem>>, vector<2x32xf32>
    %260 = arith.mulf %250, %259 : vector<2x32xf32>
    %261 = arith.mulf %244, %252 : vector<2x32xf32>
    %262 = arith.addf %260, %261 : vector<2x32xf32>
    %263 = math.tanh %262 : vector<2x32xf32>
    %264 = arith.mulf %258, %263 : vector<2x32xf32>
    %c0_112 = arith.constant 0 : index
    %c0_113 = arith.constant 0 : index
    %265 = vector.load %arg6[%c0_112, %c0_113] : memref<2x32xf32, #tpu.memory_space<vmem>>, vector<2x32xf32>
    tpu.vector_store %arg6[%c0_112, %c0_113], %262 {strides = array<i32>} : memref<2x32xf32, #tpu.memory_space<vmem>>, vector<2x32xf32>,
    %c0_114 = arith.constant 0 : index
    %c0_115 = arith.constant 0 : index
    %266 = vector.load %arg5[%c0_114, %c0_115] : memref<2x32xf32, #tpu.memory_space<vmem>>, vector<2x32xf32>
    tpu.vector_store %arg5[%c0_114, %c0_115], %264 {strides = array<i32>} : memref<2x32xf32, #tpu.memory_space<vmem>>, vector<2x32xf32>,
    %267 = arith.index_cast %c6_i32 : i32 to index
    %c0_116 = arith.constant 0 : index
    %c0_117 = arith.constant 0 : index
    %268 = vector.load %arg7[%267, %c0_116, %c0_117] : memref<8x2x32xf32, #tpu.memory_space<vmem>>, vector<1x2x32xf32>
    %269 = vector.shape_cast %268 : vector<1x2x32xf32> to vector<2x32xf32>
    %270 = vector.shape_cast %264 : vector<2x32xf32> to vector<1x2x32xf32>
    tpu.vector_store %arg7[%267, %c0_116, %c0_117], %270 {strides = array<i32>} : memref<8x2x32xf32, #tpu.memory_space<vmem>>, vector<1x2x32xf32>,
    %c7_i32 = arith.constant 7 : i32
    %271 = arith.index_cast %c7_i32 : i32 to index
    %c0_118 = arith.constant 0 : index
    %c0_119 = arith.constant 0 : index
    %272 = vector.load %arg0[%271, %c0_118, %c0_119] : memref<8x2x128xf32, #tpu.memory_space<vmem>>, vector<1x2x128xf32>
    %273 = vector.shape_cast %272 : vector<1x2x128xf32> to vector<2x128xf32>
    %c0_120 = arith.constant 0 : index
    %c0_121 = arith.constant 0 : index
    %274 = vector.load %arg5[%c0_120, %c0_121] : memref<2x32xf32, #tpu.memory_space<vmem>>, vector<2x32xf32>
    %cst_122 = arith.constant dense<0.000000e+00> : vector<2x128xf32>
    %275 = tpu.matmul %274, %0, %cst_122 {dimension_numbers = #tpu.dot_dimension_numbers<[1], [0], [0], [1], [0, 0, 1, 1], [], []>} : vector<2x32xf32>, vector<32x128xf32>, vector<2x128xf32> -> vector<2x128xf32>
    %276 = arith.addf %273, %275 : vector<2x128xf32>
    %277 = vector.extract_strided_slice %276 {offsets = [0, 0], sizes = [2, 32], strides = [1, 1]} : vector<2x128xf32> to vector<2x32xf32>
    %278 = arith.negf %277 : vector<2x32xf32>
    %279 = math.exp %278 : vector<2x32xf32>
    %cst_123 = arith.constant 1.000000e+00 : f32
    %280 = vector.broadcast %cst_123 : f32 to vector<2x32xf32>
    %281 = arith.addf %280, %279 : vector<2x32xf32>
    %282 = arith.divf %280, %281 : vector<2x32xf32>
    %283 = vector.extract_strided_slice %276 {offsets = [0, 32], sizes = [2, 32], strides = [1, 1]} : vector<2x128xf32> to vector<2x32xf32>
    %284 = arith.negf %283 : vector<2x32xf32>
    %285 = math.exp %284 : vector<2x32xf32>
    %cst_124 = arith.constant 1.000000e+00 : f32
    %286 = vector.broadcast %cst_124 : f32 to vector<2x32xf32>
    %287 = arith.addf %286, %285 : vector<2x32xf32>
    %288 = arith.divf %286, %287 : vector<2x32xf32>
    %289 = vector.extract_strided_slice %276 {offsets = [0, 64], sizes = [2, 32], strides = [1, 1]} : vector<2x128xf32> to vector<2x32xf32>
    %290 = math.tanh %289 : vector<2x32xf32>
    %291 = vector.extract_strided_slice %276 {offsets = [0, 96], sizes = [2, 32], strides = [1, 1]} : vector<2x128xf32> to vector<2x32xf32>
    %292 = arith.negf %291 : vector<2x32xf32>
    %293 = math.exp %292 : vector<2x32xf32>
    %cst_125 = arith.constant 1.000000e+00 : f32
    %294 = vector.broadcast %cst_125 : f32 to vector<2x32xf32>
    %295 = arith.addf %294, %293 : vector<2x32xf32>
    %296 = arith.divf %294, %295 : vector<2x32xf32>
    %c0_126 = arith.constant 0 : index
    %c0_127 = arith.constant 0 : index
    %297 = vector.load %arg6[%c0_126, %c0_127] : memref<2x32xf32, #tpu.memory_space<vmem>>, vector<2x32xf32>
    %298 = arith.mulf %288, %297 : vector<2x32xf32>
    %299 = arith.mulf %282, %290 : vector<2x32xf32>
    %300 = arith.addf %298, %299 : vector<2x32xf32>
    %301 = math.tanh %300 : vector<2x32xf32>
    %302 = arith.mulf %296, %301 : vector<2x32xf32>
    %c0_128 = arith.constant 0 : index
    %c0_129 = arith.constant 0 : index
    %303 = vector.load %arg6[%c0_128, %c0_129] : memref<2x32xf32, #tpu.memory_space<vmem>>, vector<2x32xf32>
    tpu.vector_store %arg6[%c0_128, %c0_129], %300 {strides = array<i32>} : memref<2x32xf32, #tpu.memory_space<vmem>>, vector<2x32xf32>,
    %c0_130 = arith.constant 0 : index
    %c0_131 = arith.constant 0 : index
    %304 = vector.load %arg5[%c0_130, %c0_131] : memref<2x32xf32, #tpu.memory_space<vmem>>, vector<2x32xf32>
    tpu.vector_store %arg5[%c0_130, %c0_131], %302 {strides = array<i32>} : memref<2x32xf32, #tpu.memory_space<vmem>>, vector<2x32xf32>,
    %305 = arith.index_cast %c7_i32 : i32 to index
    %c0_132 = arith.constant 0 : index
    %c0_133 = arith.constant 0 : index
    %306 = vector.load %arg7[%305, %c0_132, %c0_133] : memref<8x2x32xf32, #tpu.memory_space<vmem>>, vector<1x2x32xf32>
    %307 = vector.shape_cast %306 : vector<1x2x32xf32> to vector<2x32xf32>
    %308 = vector.shape_cast %302 : vector<2x32xf32> to vector<1x2x32xf32>
    tpu.vector_store %arg7[%305, %c0_132, %c0_133], %308 {strides = array<i32>} : memref<8x2x32xf32, #tpu.memory_space<vmem>>, vector<1x2x32xf32>,
    %c8_i32 = arith.constant 8 : i32
    %c0_134 = arith.constant 0 : index
    %c0_135 = arith.constant 0 : index
    %309 = vector.load %arg2[%c0_134, %c0_135] : memref<32x8xf32, #tpu.memory_space<vmem>>, vector<32x8xf32>
    %c0_136 = arith.constant 0 : index
    %c0_137 = arith.constant 0 : index
    %310 = vector.load %arg3[%c0_136, %c0_137] : memref<1x8xf32, #tpu.memory_space<vmem>>, vector<1x8xf32>
    %311 = vector.shape_cast %310 : vector<1x8xf32> to vector<1x8xf32>
    %312 = vector.broadcast %311 : vector<1x8xf32> to vector<2x8xf32>
    %c0_i32_138 = arith.constant 0 : i32
    %313 = arith.index_cast %c0_i32_138 : i32 to index
    %c0_139 = arith.constant 0 : index
    %c0_140 = arith.constant 0 : index
    %314 = vector.load %arg7[%313, %c0_139, %c0_140] : memref<8x2x32xf32, #tpu.memory_space<vmem>>, vector<1x2x32xf32>
    %315 = vector.shape_cast %314 : vector<1x2x32xf32> to vector<2x32xf32>
    %cst_141 = arith.constant dense<0.000000e+00> : vector<2x8xf32>
    %316 = tpu.matmul %315, %309, %cst_141 {dimension_numbers = #tpu.dot_dimension_numbers<[1], [0], [0], [1], [0, 0, 1, 1], [], []>} : vector<2x32xf32>, vector<32x8xf32>, vector<2x8xf32> -> vector<2x8xf32>
    %317 = arith.addf %316, %312 : vector<2x8xf32>
    %318 = arith.negf %317 : vector<2x8xf32>
    %319 = math.exp %318 : vector<2x8xf32>
    %cst_142 = arith.constant 1.000000e+00 : f32
    %320 = vector.broadcast %cst_142 : f32 to vector<2x8xf32>
    %321 = arith.addf %320, %319 : vector<2x8xf32>
    %322 = arith.divf %320, %321 : vector<2x8xf32>
    %323 = arith.index_cast %c0_i32_138 : i32 to index
    %c0_143 = arith.constant 0 : index
    %c0_144 = arith.constant 0 : index
    %324 = vector.load %arg4[%323, %c0_143, %c0_144] : memref<8x2x8xf32, #tpu.memory_space<vmem>>, vector<1x2x8xf32>
    %325 = vector.shape_cast %324 : vector<1x2x8xf32> to vector<2x8xf32>
    %326 = vector.shape_cast %322 : vector<2x8xf32> to vector<1x2x8xf32>
    tpu.vector_store %arg4[%323, %c0_143, %c0_144], %326 {strides = array<i32>} : memref<8x2x8xf32, #tpu.memory_space<vmem>>, vector<1x2x8xf32>,
    %c1_i32_145 = arith.constant 1 : i32
    %327 = arith.index_cast %c1_i32_145 : i32 to index
    %c0_146 = arith.constant 0 : index
    %c0_147 = arith.constant 0 : index
    %328 = vector.load %arg7[%327, %c0_146, %c0_147] : memref<8x2x32xf32, #tpu.memory_space<vmem>>, vector<1x2x32xf32>
    %329 = vector.shape_cast %328 : vector<1x2x32xf32> to vector<2x32xf32>
    %cst_148 = arith.constant dense<0.000000e+00> : vector<2x8xf32>
    %330 = tpu.matmul %329, %309, %cst_148 {dimension_numbers = #tpu.dot_dimension_numbers<[1], [0], [0], [1], [0, 0, 1, 1], [], []>} : vector<2x32xf32>, vector<32x8xf32>, vector<2x8xf32> -> vector<2x8xf32>
    %331 = arith.addf %330, %312 : vector<2x8xf32>
    %332 = arith.negf %331 : vector<2x8xf32>
    %333 = math.exp %332 : vector<2x8xf32>
    %cst_149 = arith.constant 1.000000e+00 : f32
    %334 = vector.broadcast %cst_149 : f32 to vector<2x8xf32>
    %335 = arith.addf %334, %333 : vector<2x8xf32>
    %336 = arith.divf %334, %335 : vector<2x8xf32>
    %337 = arith.index_cast %c1_i32_145 : i32 to index
    %c0_150 = arith.constant 0 : index
    %c0_151 = arith.constant 0 : index
    %338 = vector.load %arg4[%337, %c0_150, %c0_151] : memref<8x2x8xf32, #tpu.memory_space<vmem>>, vector<1x2x8xf32>
    %339 = vector.shape_cast %338 : vector<1x2x8xf32> to vector<2x8xf32>
    %340 = vector.shape_cast %336 : vector<2x8xf32> to vector<1x2x8xf32>
    tpu.vector_store %arg4[%337, %c0_150, %c0_151], %340 {strides = array<i32>} : memref<8x2x8xf32, #tpu.memory_space<vmem>>, vector<1x2x8xf32>,
    %c2_i32_152 = arith.constant 2 : i32
    %341 = arith.index_cast %c2_i32_152 : i32 to index
    %c0_153 = arith.constant 0 : index
    %c0_154 = arith.constant 0 : index
    %342 = vector.load %arg7[%341, %c0_153, %c0_154] : memref<8x2x32xf32, #tpu.memory_space<vmem>>, vector<1x2x32xf32>
    %343 = vector.shape_cast %342 : vector<1x2x32xf32> to vector<2x32xf32>
    %cst_155 = arith.constant dense<0.000000e+00> : vector<2x8xf32>
    %344 = tpu.matmul %343, %309, %cst_155 {dimension_numbers = #tpu.dot_dimension_numbers<[1], [0], [0], [1], [0, 0, 1, 1], [], []>} : vector<2x32xf32>, vector<32x8xf32>, vector<2x8xf32> -> vector<2x8xf32>
    %345 = arith.addf %344, %312 : vector<2x8xf32>
    %346 = arith.negf %345 : vector<2x8xf32>
    %347 = math.exp %346 : vector<2x8xf32>
    %cst_156 = arith.constant 1.000000e+00 : f32
    %348 = vector.broadcast %cst_156 : f32 to vector<2x8xf32>
    %349 = arith.addf %348, %347 : vector<2x8xf32>
    %350 = arith.divf %348, %349 : vector<2x8xf32>
    %351 = arith.index_cast %c2_i32_152 : i32 to index
    %c0_157 = arith.constant 0 : index
    %c0_158 = arith.constant 0 : index
    %352 = vector.load %arg4[%351, %c0_157, %c0_158] : memref<8x2x8xf32, #tpu.memory_space<vmem>>, vector<1x2x8xf32>
    %353 = vector.shape_cast %352 : vector<1x2x8xf32> to vector<2x8xf32>
    %354 = vector.shape_cast %350 : vector<2x8xf32> to vector<1x2x8xf32>
    tpu.vector_store %arg4[%351, %c0_157, %c0_158], %354 {strides = array<i32>} : memref<8x2x8xf32, #tpu.memory_space<vmem>>, vector<1x2x8xf32>,
    %c3_i32_159 = arith.constant 3 : i32
    %355 = arith.index_cast %c3_i32_159 : i32 to index
    %c0_160 = arith.constant 0 : index
    %c0_161 = arith.constant 0 : index
    %356 = vector.load %arg7[%355, %c0_160, %c0_161] : memref<8x2x32xf32, #tpu.memory_space<vmem>>, vector<1x2x32xf32>
    %357 = vector.shape_cast %356 : vector<1x2x32xf32> to vector<2x32xf32>
    %cst_162 = arith.constant dense<0.000000e+00> : vector<2x8xf32>
    %358 = tpu.matmul %357, %309, %cst_162 {dimension_numbers = #tpu.dot_dimension_numbers<[1], [0], [0], [1], [0, 0, 1, 1], [], []>} : vector<2x32xf32>, vector<32x8xf32>, vector<2x8xf32> -> vector<2x8xf32>
    %359 = arith.addf %358, %312 : vector<2x8xf32>
    %360 = arith.negf %359 : vector<2x8xf32>
    %361 = math.exp %360 : vector<2x8xf32>
    %cst_163 = arith.constant 1.000000e+00 : f32
    %362 = vector.broadcast %cst_163 : f32 to vector<2x8xf32>
    %363 = arith.addf %362, %361 : vector<2x8xf32>
    %364 = arith.divf %362, %363 : vector<2x8xf32>
    %365 = arith.index_cast %c3_i32_159 : i32 to index
    %c0_164 = arith.constant 0 : index
    %c0_165 = arith.constant 0 : index
    %366 = vector.load %arg4[%365, %c0_164, %c0_165] : memref<8x2x8xf32, #tpu.memory_space<vmem>>, vector<1x2x8xf32>
    %367 = vector.shape_cast %366 : vector<1x2x8xf32> to vector<2x8xf32>
    %368 = vector.shape_cast %364 : vector<2x8xf32> to vector<1x2x8xf32>
    tpu.vector_store %arg4[%365, %c0_164, %c0_165], %368 {strides = array<i32>} : memref<8x2x8xf32, #tpu.memory_space<vmem>>, vector<1x2x8xf32>,
    %c4_i32_166 = arith.constant 4 : i32
    %369 = arith.index_cast %c4_i32_166 : i32 to index
    %c0_167 = arith.constant 0 : index
    %c0_168 = arith.constant 0 : index
    %370 = vector.load %arg7[%369, %c0_167, %c0_168] : memref<8x2x32xf32, #tpu.memory_space<vmem>>, vector<1x2x32xf32>
    %371 = vector.shape_cast %370 : vector<1x2x32xf32> to vector<2x32xf32>
    %cst_169 = arith.constant dense<0.000000e+00> : vector<2x8xf32>
    %372 = tpu.matmul %371, %309, %cst_169 {dimension_numbers = #tpu.dot_dimension_numbers<[1], [0], [0], [1], [0, 0, 1, 1], [], []>} : vector<2x32xf32>, vector<32x8xf32>, vector<2x8xf32> -> vector<2x8xf32>
    %373 = arith.addf %372, %312 : vector<2x8xf32>
    %374 = arith.negf %373 : vector<2x8xf32>
    %375 = math.exp %374 : vector<2x8xf32>
    %cst_170 = arith.constant 1.000000e+00 : f32
    %376 = vector.broadcast %cst_170 : f32 to vector<2x8xf32>
    %377 = arith.addf %376, %375 : vector<2x8xf32>
    %378 = arith.divf %376, %377 : vector<2x8xf32>
    %379 = arith.index_cast %c4_i32_166 : i32 to index
    %c0_171 = arith.constant 0 : index
    %c0_172 = arith.constant 0 : index
    %380 = vector.load %arg4[%379, %c0_171, %c0_172] : memref<8x2x8xf32, #tpu.memory_space<vmem>>, vector<1x2x8xf32>
    %381 = vector.shape_cast %380 : vector<1x2x8xf32> to vector<2x8xf32>
    %382 = vector.shape_cast %378 : vector<2x8xf32> to vector<1x2x8xf32>
    tpu.vector_store %arg4[%379, %c0_171, %c0_172], %382 {strides = array<i32>} : memref<8x2x8xf32, #tpu.memory_space<vmem>>, vector<1x2x8xf32>,
    %c5_i32_173 = arith.constant 5 : i32
    %383 = arith.index_cast %c5_i32_173 : i32 to index
    %c0_174 = arith.constant 0 : index
    %c0_175 = arith.constant 0 : index
    %384 = vector.load %arg7[%383, %c0_174, %c0_175] : memref<8x2x32xf32, #tpu.memory_space<vmem>>, vector<1x2x32xf32>
    %385 = vector.shape_cast %384 : vector<1x2x32xf32> to vector<2x32xf32>
    %cst_176 = arith.constant dense<0.000000e+00> : vector<2x8xf32>
    %386 = tpu.matmul %385, %309, %cst_176 {dimension_numbers = #tpu.dot_dimension_numbers<[1], [0], [0], [1], [0, 0, 1, 1], [], []>} : vector<2x32xf32>, vector<32x8xf32>, vector<2x8xf32> -> vector<2x8xf32>
    %387 = arith.addf %386, %312 : vector<2x8xf32>
    %388 = arith.negf %387 : vector<2x8xf32>
    %389 = math.exp %388 : vector<2x8xf32>
    %cst_177 = arith.constant 1.000000e+00 : f32
    %390 = vector.broadcast %cst_177 : f32 to vector<2x8xf32>
    %391 = arith.addf %390, %389 : vector<2x8xf32>
    %392 = arith.divf %390, %391 : vector<2x8xf32>
    %393 = arith.index_cast %c5_i32_173 : i32 to index
    %c0_178 = arith.constant 0 : index
    %c0_179 = arith.constant 0 : index
    %394 = vector.load %arg4[%393, %c0_178, %c0_179] : memref<8x2x8xf32, #tpu.memory_space<vmem>>, vector<1x2x8xf32>
    %395 = vector.shape_cast %394 : vector<1x2x8xf32> to vector<2x8xf32>
    %396 = vector.shape_cast %392 : vector<2x8xf32> to vector<1x2x8xf32>
    tpu.vector_store %arg4[%393, %c0_178, %c0_179], %396 {strides = array<i32>} : memref<8x2x8xf32, #tpu.memory_space<vmem>>, vector<1x2x8xf32>,
    %c6_i32_180 = arith.constant 6 : i32
    %397 = arith.index_cast %c6_i32_180 : i32 to index
    %c0_181 = arith.constant 0 : index
    %c0_182 = arith.constant 0 : index
    %398 = vector.load %arg7[%397, %c0_181, %c0_182] : memref<8x2x32xf32, #tpu.memory_space<vmem>>, vector<1x2x32xf32>
    %399 = vector.shape_cast %398 : vector<1x2x32xf32> to vector<2x32xf32>
    %cst_183 = arith.constant dense<0.000000e+00> : vector<2x8xf32>
    %400 = tpu.matmul %399, %309, %cst_183 {dimension_numbers = #tpu.dot_dimension_numbers<[1], [0], [0], [1], [0, 0, 1, 1], [], []>} : vector<2x32xf32>, vector<32x8xf32>, vector<2x8xf32> -> vector<2x8xf32>
    %401 = arith.addf %400, %312 : vector<2x8xf32>
    %402 = arith.negf %401 : vector<2x8xf32>
    %403 = math.exp %402 : vector<2x8xf32>
    %cst_184 = arith.constant 1.000000e+00 : f32
    %404 = vector.broadcast %cst_184 : f32 to vector<2x8xf32>
    %405 = arith.addf %404, %403 : vector<2x8xf32>
    %406 = arith.divf %404, %405 : vector<2x8xf32>
    %407 = arith.index_cast %c6_i32_180 : i32 to index
    %c0_185 = arith.constant 0 : index
    %c0_186 = arith.constant 0 : index
    %408 = vector.load %arg4[%407, %c0_185, %c0_186] : memref<8x2x8xf32, #tpu.memory_space<vmem>>, vector<1x2x8xf32>
    %409 = vector.shape_cast %408 : vector<1x2x8xf32> to vector<2x8xf32>
    %410 = vector.shape_cast %406 : vector<2x8xf32> to vector<1x2x8xf32>
    tpu.vector_store %arg4[%407, %c0_185, %c0_186], %410 {strides = array<i32>} : memref<8x2x8xf32, #tpu.memory_space<vmem>>, vector<1x2x8xf32>,
    %c7_i32_187 = arith.constant 7 : i32
    %411 = arith.index_cast %c7_i32_187 : i32 to index
    %c0_188 = arith.constant 0 : index
    %c0_189 = arith.constant 0 : index
    %412 = vector.load %arg7[%411, %c0_188, %c0_189] : memref<8x2x32xf32, #tpu.memory_space<vmem>>, vector<1x2x32xf32>
    %413 = vector.shape_cast %412 : vector<1x2x32xf32> to vector<2x32xf32>
    %cst_190 = arith.constant dense<0.000000e+00> : vector<2x8xf32>
    %414 = tpu.matmul %413, %309, %cst_190 {dimension_numbers = #tpu.dot_dimension_numbers<[1], [0], [0], [1], [0, 0, 1, 1], [], []>} : vector<2x32xf32>, vector<32x8xf32>, vector<2x8xf32> -> vector<2x8xf32>
    %415 = arith.addf %414, %312 : vector<2x8xf32>
    %416 = arith.negf %415 : vector<2x8xf32>
    %417 = math.exp %416 : vector<2x8xf32>
    %cst_191 = arith.constant 1.000000e+00 : f32
    %418 = vector.broadcast %cst_191 : f32 to vector<2x8xf32>
    %419 = arith.addf %418, %417 : vector<2x8xf32>
    %420 = arith.divf %418, %419 : vector<2x8xf32>
    %421 = arith.index_cast %c7_i32_187 : i32 to index
    %c0_192 = arith.constant 0 : index
    %c0_193 = arith.constant 0 : index
    %422 = vector.load %arg4[%421, %c0_192, %c0_193] : memref<8x2x8xf32, #tpu.memory_space<vmem>>, vector<1x2x8xf32>
    %423 = vector.shape_cast %422 : vector<1x2x8xf32> to vector<2x8xf32>
    %424 = vector.shape_cast %420 : vector<2x8xf32> to vector<1x2x8xf32>
    tpu.vector_store %arg4[%421, %c0_192, %c0_193], %424 {strides = array<i32>} : memref<8x2x8xf32, #tpu.memory_space<vmem>>, vector<1x2x8xf32>,
    %c8_i32_194 = arith.constant 8 : i32
    return
  }
}

</mosaic_0001>

<llo_original>
// kernel: lstm_forward.1
$region0: #{lstm_forward.1}
  #allocation0 [shape = 'u32[]', space=smem, size = 0x4, offset = 0x4, fixed_abs, tag = 'smem constant byte address 0x4 - core index']
  #allocation1 [shape = 'u32[72,128]{1,0:T(1,128)}', space=vmem, size = 0x9000, scoped, tag = 'internal scratch']
  #allocation2 [shape = 'f32[2,32]{1,0:T(2,128)}', space=vmem, size = 0x400, scoped, tag = 'scratch operand']
  #allocation3 [shape = 'f32[2,32]{1,0:T(2,128)}', space=vmem, size = 0x400, scoped, tag = 'scratch operand']
  #allocation4 [shape = 'f32[8,2,32]{2,1,0:T(2,128)}', space=vmem, size = 0x2000, scoped, tag = 'scratch operand']
  %s0 = inlined_call_operand.vmem [shape: f32[8,2,128], index: 0, kind: input, shape index: {}]
  %s1 = inlined_call_operand.vmem [shape: f32[32,128], index: 1, kind: input, shape index: {}]
  %s2 = inlined_call_operand.vmem [shape: f32[32,8], index: 2, kind: input, shape index: {}]
  %s3 = inlined_call_operand.vmem [shape: f32[1,8], index: 3, kind: input, shape index: {}]
  %s4 = inlined_call_operand.hbm [shape: f32[8,2,8], index: 4, kind: output, shape index: {}]
  %s5 = sld [smem:[#allocation0]]
  $region26: #{lstm_forward.1} parent=0
    _
  %s7 = ssub.s32 1, %s5
  %s8 = scalar_select 0, %s7, %s5
  $region1: #{lstm_forward.1} parent=0
    #allocation5 [shape = 'u8[8192]{0}', space=vmem, size = 0x2000, scoped, tag = 'output window, operand 0, single buffered']
    #allocation6 [shape = 's32[1]{0}', space=sflag, size = 0x4, scoped, tag = 'scoped memory for lstm_forward.1']
    %9 = vsyncpa [#allocation6], 0
    // Predicated region
    $region2: #{lstm_forward.1} parent=1 // pred_check
      _
    $region3: #{lstm_forward.1} parent=1 // pred_check_branch
      %11 = sbr.rel (0) target = $region5
    $region4: #{lstm_forward.1} parent=1 // pred_region
      _
    $region5: #{lstm_forward.1} parent=1 // pred_fallthru
      _
    // Predicated region
    $region6: #{lstm_forward.1} parent=1 // pred_check
      _
    $region7: #{lstm_forward.1} parent=1 // pred_check_branch
      %13 = sbr.rel (0) target = $region9
    $region8: #{lstm_forward.1} parent=1 // pred_region
      _
    $region9: #{lstm_forward.1} parent=1 // pred_fallthru
      _
    // Predicated region
    $region10: #{lstm_forward.1} parent=1 // pred_check
      _
    $region11: #{lstm_forward.1} parent=1 // pred_check_branch
      %15 = sbr.rel (0) target = $region13
    $region12: #{lstm_forward.1} parent=1 // pred_region
      _
    $region13: #{lstm_forward.1} parent=1 // pred_fallthru
      _
    // Predicated region
    $region14: #{lstm_forward.1} parent=1 // pred_check
      _
    $region15: #{lstm_forward.1} parent=1 // pred_check_branch
      %17 = sbr.rel (0) target = $region17
    $region16: #{lstm_forward.1} parent=1 // pred_region
      _
    $region17: #{lstm_forward.1} parent=1 // pred_fallthru
      _
    %v18 = vld [vmem:[%s1] sm:$0xff]
    %v19 = vld [vmem:[%s1 + $0x8] sm:$0xff]
    %v20 = vld [vmem:[%s1 + $0x10] sm:$0xff]
    %v21 = vld [vmem:[%s1 + $0x18] sm:$0xff]
    %vm22 = vcmask 254976
    %23 = vst.msk [vmem:[#allocation2] sm:$0x3] %vm22, 0.0
    %24 = vst.msk [vmem:[#allocation3] sm:$0x3] %vm22, 0.0
    %v25 = vld [vmem:[%s0] sm:$0x3]
    %v26 = vld [vmem:[#allocation2] sm:$0x3]
    %vm27 = vcmask 261120
    %v29 = vsel %vm27, %v26, 0
    %31 = vmatpush.msra.mxu0 0.0
    %32 = vmatpush.msra.mxu0 0.0
    %33 = vmatpush.msra.mxu0 0.0
    %34 = vmatpush.msra.mxu0 0.0
    %35 = vmatpush.msra.mxu0 0.0
    %36 = vmatpush.msra.mxu0 0.0
    %37 = vmatpush.msra.mxu0 0.0
    %38 = vmatpush.msra.mxu0 0.0
    %39 = vmatpush.msra.mxu0 0.0
    %40 = vmatpush.msra.mxu0 0.0
    %41 = vmatpush.msra.mxu0 0.0
    %42 = vmatpush.msra.mxu0 0.0
    %43 = vmatpush.msra.mxu0 %v21
    %44 = vmatpush.msra.mxu0 %v20
    %45 = vmatpush.msra.mxu0 %v19
    %46 = vmatpush.msra.mxu0 %v18
    %47 = vmatmul.f32.gmra.mxu0 %v29
    %v48 = vpop.f32.mrf.mxu0
    %v49 = vadd.f32 0.0, %v48
    %50 = vdwg.mxu0
    %v51 = vadd.f32 %v25, %v49
    %v52 = vxor.u32 %v51, 2147483648
    %v53 = vmul.f32 %v52, 1.442695
    %v54 = vpow.pop %v53
    %v55 = vadd.f32 %v54, 1.0
    %v56 = vrcp.pop %v55
    %v57 = vmul.f32 %v55, %v56
    %v58 = vsub.f32 1.0, %v57
    %v59 = vmul.f32 %v56, %v58
    %v60 = vadd.f32 %v56, %v59
    %vm61 = vweird.f32 %v55
    %vm62 = vweird.f32 %v56
    %vm63 = vmor %vm61, %vm62
    %v64 = vsel %vm63, %v56, %v60
    %v65 = vand.u32 2147483647, %v55
    %vm66 = vcmp.eq.f32.partialorder %v65, 8.507059e+37
    %v67 = vand.u32 %v55, 2147483648
    %v68 = vor.u32 1.1754944e-38, %v67
    %v69 = vsel %vm66, %v68, %v64
    %v70 = vmul.f32 1.0, %v69
    %v71 = vtanh.pop %v51
    %v72 = vld [vmem:[#allocation3] sm:$0x3]
    %74 = vrot.lane.b32.xlu0 %v72, 32
    %v75 = vpop.permute.xlu0 %74
    %v77 = vmul.f32 %v70, %v75
    %79 = vrot.lane.b32.xlu0 %v71, 64
    %v80 = vpop.permute.xlu0 %79
    %v82 = vmul.f32 %v70, %v80
    %84 = vrot.lane.b32.xlu0 %v82, 32
    %v85 = vpop.permute.xlu0 %84
    %v87 = vadd.f32 %v77, %v85
    %v88 = vtanh.pop %v87
    %90 = vrot.lane.b32.xlu0 %v88, 64
    %v91 = vpop.permute.xlu0 %90
    %v93 = vmul.f32 %v70, %v91
    %95 = vrot.lane.b32.xlu0 %v87, 96
    %v96 = vpop.permute.xlu0 %95
    %98 = vst.msk [vmem:[#allocation3] sm:$0x3] %vm22, %v96
    %100 = vrot.lane.b32.xlu0 %v93, 32
    %v101 = vpop.permute.xlu0 %100
    %103 = vst.msk [vmem:[#allocation2] sm:$0x3] %vm22, %v101
    %104 = vst.msk [vmem:[#allocation4] sm:$0x3] %vm22, %v101
    %s105 = scalar_lea.vmem %s0, 2
    %v106 = vld [vmem:[%s105] sm:$0x3]
    %v107 = vld [vmem:[#allocation2] sm:$0x3]
    %v109 = vsel %vm27, %v107, 0
    %111 = vmatpush.msra.mxu0 0.0
    %112 = vmatpush.msra.mxu0 0.0
    %113 = vmatpush.msra.mxu0 0.0
    %114 = vmatpush.msra.mxu0 0.0
    %115 = vmatpush.msra.mxu0 0.0
    %116 = vmatpush.msra.mxu0 0.0
    %117 = vmatpush.msra.mxu0 0.0
    %118 = vmatpush.msra.mxu0 0.0
    %119 = vmatpush.msra.mxu0 0.0
    %120 = vmatpush.msra.mxu0 0.0
    %121 = vmatpush.msra.mxu0 0.0
    %122 = vmatpush.msra.mxu0 0.0
    %123 = vmatpush.msra.mxu0 %v21
    %124 = vmatpush.msra.mxu0 %v20
    %125 = vmatpush.msra.mxu0 %v19
    %126 = vmatpush.msra.mxu0 %v18
    %127 = vmatmul.f32.gmra.mxu0 %v109
    %v128 = vpop.f32.mrf.mxu0
    %v129 = vadd.f32 0.0, %v128
    %130 = vdwg.mxu0
    %v131 = vadd.f32 %v106, %v129
    %v132 = vxor.u32 %v131, 2147483648
    %v133 = vmul.f32 %v132, 1.442695
    %v134 = vpow.pop %v133
    %v135 = vadd.f32 %v134, 1.0
    %v136 = vrcp.pop %v135
    %v137 = vmul.f32 %v135, %v136
    %v138 = vsub.f32 1.0, %v137
    %v139 = vmul.f32 %v136, %v138
    %v140 = vadd.f32 %v136, %v139
    %vm141 = vweird.f32 %v135
    %vm142 = vweird.f32 %v136
    %vm143 = vmor %vm141, %vm142
    %v144 = vsel %vm143, %v136, %v140
    %v145 = vand.u32 2147483647, %v135
    %vm146 = vcmp.eq.f32.partialorder %v145, 8.507059e+37
    %v147 = vand.u32 %v135, 2147483648
    %v148 = vor.u32 1.1754944e-38, %v147
    %v149 = vsel %vm146, %v148, %v144
    %v150 = vmul.f32 1.0, %v149
    %v151 = vtanh.pop %v131
    %v152 = vld [vmem:[#allocation3] sm:$0x3]
    %154 = vrot.lane.b32.xlu0 %v152, 32
    %v155 = vpop.permute.xlu0 %154
    %v157 = vmul.f32 %v150, %v155
    %159 = vrot.lane.b32.xlu0 %v151, 64
    %v160 = vpop.permute.xlu0 %159
    %v162 = vmul.f32 %v150, %v160
    %164 = vrot.lane.b32.xlu0 %v162, 32
    %v165 = vpop.permute.xlu0 %164
    %v167 = vadd.f32 %v157, %v165
    %v168 = vtanh.pop %v167
    %170 = vrot.lane.b32.xlu0 %v168, 64
    %v171 = vpop.permute.xlu0 %170
    %v173 = vmul.f32 %v150, %v171
    %175 = vrot.lane.b32.xlu0 %v167, 96
    %v176 = vpop.permute.xlu0 %175
    %178 = vst.msk [vmem:[#allocation3] sm:$0x3] %vm22, %v176
    %180 = vrot.lane.b32.xlu0 %v173, 32
    %v181 = vpop.permute.xlu0 %180
    %183 = vst.msk [vmem:[#allocation2] sm:$0x3] %vm22, %v181
    %s184 = scalar_lea.vmem [#allocation4], 2
    %185 = vst.msk [vmem:[%s184] sm:$0x3] %vm22, %v181
    %s186 = scalar_lea.vmem %s0, 4
    %v187 = vld [vmem:[%s186] sm:$0x3]
    %v188 = vld [vmem:[#allocation2] sm:$0x3]
    %v190 = vsel %vm27, %v188, 0
    %192 = vmatpush.msra.mxu0 0.0
    %193 = vmatpush.msra.mxu0 0.0
    %194 = vmatpush.msra.mxu0 0.0
    %195 = vmatpush.msra.mxu0 0.0
    %196 = vmatpush.msra.mxu0 0.0
    %197 = vmatpush.msra.mxu0 0.0
    %198 = vmatpush.msra.mxu0 0.0
    %199 = vmatpush.msra.mxu0 0.0
    %200 = vmatpush.msra.mxu0 0.0
    %201 = vmatpush.msra.mxu0 0.0
    %202 = vmatpush.msra.mxu0 0.0
    %203 = vmatpush.msra.mxu0 0.0
    %204 = vmatpush.msra.mxu0 %v21
    %205 = vmatpush.msra.mxu0 %v20
    %206 = vmatpush.msra.mxu0 %v19
    %207 = vmatpush.msra.mxu0 %v18
    %208 = vmatmul.f32.gmra.mxu0 %v190
    %v209 = vpop.f32.mrf.mxu0
    %v210 = vadd.f32 0.0, %v209
    %211 = vdwg.mxu0
    %v212 = vadd.f32 %v187, %v210
    %v213 = vxor.u32 %v212, 2147483648
    %v214 = vmul.f32 %v213, 1.442695
    %v215 = vpow.pop %v214
    %v216 = vadd.f32 %v215, 1.0
    %v217 = vrcp.pop %v216
    %v218 = vmul.f32 %v216, %v217
    %v219 = vsub.f32 1.0, %v218
    %v220 = vmul.f32 %v217, %v219
    %v221 = vadd.f32 %v217, %v220
    %vm222 = vweird.f32 %v216
    %vm223 = vweird.f32 %v217
    %vm224 = vmor %vm222, %vm223
    %v225 = vsel %vm224, %v217, %v221
    %v226 = vand.u32 2147483647, %v216
    %vm227 = vcmp.eq.f32.partialorder %v226, 8.507059e+37
    %v228 = vand.u32 %v216, 2147483648
    %v229 = vor.u32 1.1754944e-38, %v228
    %v230 = vsel %vm227, %v229, %v225
    %v231 = vmul.f32 1.0, %v230
    %v232 = vtanh.pop %v212
    %v233 = vld [vmem:[#allocation3] sm:$0x3]
    %235 = vrot.lane.b32.xlu0 %v233, 32
    %v236 = vpop.permute.xlu0 %235
    %v238 = vmul.f32 %v231, %v236
    %240 = vrot.lane.b32.xlu0 %v232, 64
    %v241 = vpop.permute.xlu0 %240
    %v243 = vmul.f32 %v231, %v241
    %245 = vrot.lane.b32.xlu0 %v243, 32
    %v246 = vpop.permute.xlu0 %245
    %v248 = vadd.f32 %v238, %v246
    %v249 = vtanh.pop %v248
    %251 = vrot.lane.b32.xlu0 %v249, 64
    %v252 = vpop.permute.xlu0 %251
    %v254 = vmul.f32 %v231, %v252
    %256 = vrot.lane.b32.xlu0 %v248, 96
    %v257 = vpop.permute.xlu0 %256
    %259 = vst.msk [vmem:[#allocation3] sm:$0x3] %vm22, %v257
    %261 = vrot.lane.b32.xlu0 %v254, 32
    %v262 = vpop.permute.xlu0 %261
    %264 = vst.msk [vmem:[#allocation2] sm:$0x3] %vm22, %v262
    %s265 = scalar_lea.vmem [#allocation4], 4
    %266 = vst.msk [vmem:[%s265] sm:$0x3] %vm22, %v262
    %s267 = scalar_lea.vmem %s0, 6
    %v268 = vld [vmem:[%s267] sm:$0x3]
    %v269 = vld [vmem:[#allocation2] sm:$0x3]
    %v271 = vsel %vm27, %v269, 0
    %273 = vmatpush.msra.mxu0 0.0
    %274 = vmatpush.msra.mxu0 0.0
    %275 = vmatpush.msra.mxu0 0.0
    %276 = vmatpush.msra.mxu0 0.0
    %277 = vmatpush.msra.mxu0 0.0
    %278 = vmatpush.msra.mxu0 0.0
    %279 = vmatpush.msra.mxu0 0.0
    %280 = vmatpush.msra.mxu0 0.0
    %281 = vmatpush.msra.mxu0 0.0
    %282 = vmatpush.msra.mxu0 0.0
    %283 = vmatpush.msra.mxu0 0.0
    %284 = vmatpush.msra.mxu0 0.0
    %285 = vmatpush.msra.mxu0 %v21
    %286 = vmatpush.msra.mxu0 %v20
    %287 = vmatpush.msra.mxu0 %v19
    %288 = vmatpush.msra.mxu0 %v18
    %289 = vmatmul.f32.gmra.mxu0 %v271
    %v290 = vpop.f32.mrf.mxu0
    %v291 = vadd.f32 0.0, %v290
    %292 = vdwg.mxu0
    %v293 = vadd.f32 %v268, %v291
    %v294 = vxor.u32 %v293, 2147483648
    %v295 = vmul.f32 %v294, 1.442695
    %v296 = vpow.pop %v295
    %v297 = vadd.f32 %v296, 1.0
    %v298 = vrcp.pop %v297
    %v299 = vmul.f32 %v297, %v298
    %v300 = vsub.f32 1.0, %v299
    %v301 = vmul.f32 %v298, %v300
    %v302 = vadd.f32 %v298, %v301
    %vm303 = vweird.f32 %v297
    %vm304 = vweird.f32 %v298
    %vm305 = vmor %vm303, %vm304
    %v306 = vsel %vm305, %v298, %v302
    %v307 = vand.u32 2147483647, %v297
    %vm308 = vcmp.eq.f32.partialorder %v307, 8.507059e+37
    %v309 = vand.u32 %v297, 2147483648
    %v310 = vor.u32 1.1754944e-38, %v309
    %v311 = vsel %vm308, %v310, %v306
    %v312 = vmul.f32 1.0, %v311
    %v313 = vtanh.pop %v293
    %v314 = vld [vmem:[#allocation3] sm:$0x3]
    %316 = vrot.lane.b32.xlu0 %v314, 32
    %v317 = vpop.permute.xlu0 %316
    %v319 = vmul.f32 %v312, %v317
    %321 = vrot.lane.b32.xlu0 %v313, 64
    %v322 = vpop.permute.xlu0 %321
    %v324 = vmul.f32 %v312, %v322
    %326 = vrot.lane.b32.xlu0 %v324, 32
    %v327 = vpop.permute.xlu0 %326
    %v329 = vadd.f32 %v319, %v327
    %v330 = vtanh.pop %v329
    %332 = vrot.lane.b32.xlu0 %v330, 64
    %v333 = vpop.permute.xlu0 %332
    %v335 = vmul.f32 %v312, %v333
    %337 = vrot.lane.b32.xlu0 %v329, 96
    %v338 = vpop.permute.xlu0 %337
    %340 = vst.msk [vmem:[#allocation3] sm:$0x3] %vm22, %v338
    %342 = vrot.lane.b32.xlu0 %v335, 32
    %v343 = vpop.permute.xlu0 %342
    %345 = vst.msk [vmem:[#allocation2] sm:$0x3] %vm22, %v343
    %s346 = scalar_lea.vmem [#allocation4], 6
    %347 = vst.msk [vmem:[%s346] sm:$0x3] %vm22, %v343
    %s348 = scalar_lea.vmem %s0, 8
    %v349 = vld [vmem:[%s348] sm:$0x3]
    %v350 = vld [vmem:[#allocation2] sm:$0x3]
    %v352 = vsel %vm27, %v350, 0
    %354 = vmatpush.msra.mxu0 0.0
    %355 = vmatpush.msra.mxu0 0.0
    %356 = vmatpush.msra.mxu0 0.0
    %357 = vmatpush.msra.mxu0 0.0
    %358 = vmatpush.msra.mxu0 0.0
    %359 = vmatpush.msra.mxu0 0.0
    %360 = vmatpush.msra.mxu0 0.0
    %361 = vmatpush.msra.mxu0 0.0
    %362 = vmatpush.msra.mxu0 0.0
    %363 = vmatpush.msra.mxu0 0.0
    %364 = vmatpush.msra.mxu0 0.0
    %365 = vmatpush.msra.mxu0 0.0
    %366 = vmatpush.msra.mxu0 %v21
    %367 = vmatpush.msra.mxu0 %v20
    %368 = vmatpush.msra.mxu0 %v19
    %369 = vmatpush.msra.mxu0 %v18
    %370 = vmatmul.f32.gmra.mxu0 %v352
    %v371 = vpop.f32.mrf.mxu0
    %v372 = vadd.f32 0.0, %v371
    %373 = vdwg.mxu0
    %v374 = vadd.f32 %v349, %v372
    %v375 = vxor.u32 %v374, 2147483648
    %v376 = vmul.f32 %v375, 1.442695
    %v377 = vpow.pop %v376
    %v378 = vadd.f32 %v377, 1.0
    %v379 = vrcp.pop %v378
    %v380 = vmul.f32 %v378, %v379
    %v381 = vsub.f32 1.0, %v380
    %v382 = vmul.f32 %v379, %v381
    %v383 = vadd.f32 %v379, %v382
    %vm384 = vweird.f32 %v378
    %vm385 = vweird.f32 %v379
    %vm386 = vmor %vm384, %vm385
    %v387 = vsel %vm386, %v379, %v383
    %v388 = vand.u32 2147483647, %v378
    %vm389 = vcmp.eq.f32.partialorder %v388, 8.507059e+37
    %v390 = vand.u32 %v378, 2147483648
    %v391 = vor.u32 1.1754944e-38, %v390
    %v392 = vsel %vm389, %v391, %v387
    %v393 = vmul.f32 1.0, %v392
    %v394 = vtanh.pop %v374
    %v395 = vld [vmem:[#allocation3] sm:$0x3]
    %397 = vrot.lane.b32.xlu0 %v395, 32
    %v398 = vpop.permute.xlu0 %397
    %v400 = vmul.f32 %v393, %v398
    %402 = vrot.lane.b32.xlu0 %v394, 64
    %v403 = vpop.permute.xlu0 %402
    %v405 = vmul.f32 %v393, %v403
    %407 = vrot.lane.b32.xlu0 %v405, 32
    %v408 = vpop.permute.xlu0 %407
    %v410 = vadd.f32 %v400, %v408
    %v411 = vtanh.pop %v410
    %413 = vrot.lane.b32.xlu0 %v411, 64
    %v414 = vpop.permute.xlu0 %413
    %v416 = vmul.f32 %v393, %v414
    %418 = vrot.lane.b32.xlu0 %v410, 96
    %v419 = vpop.permute.xlu0 %418
    %421 = vst.msk [vmem:[#allocation3] sm:$0x3] %vm22, %v419
    %423 = vrot.lane.b32.xlu0 %v416, 32
    %v424 = vpop.permute.xlu0 %423
    %426 = vst.msk [vmem:[#allocation2] sm:$0x3] %vm22, %v424
    %s427 = scalar_lea.vmem [#allocation4], 8
    %428 = vst.msk [vmem:[%s427] sm:$0x3] %vm22, %v424
    %s429 = scalar_lea.vmem %s0, 10
    %v430 = vld [vmem:[%s429] sm:$0x3]
    %v431 = vld [vmem:[#allocation2] sm:$0x3]
    %v433 = vsel %vm27, %v431, 0
    %435 = vmatpush.msra.mxu0 0.0
    %436 = vmatpush.msra.mxu0 0.0
    %437 = vmatpush.msra.mxu0 0.0
    %438 = vmatpush.msra.mxu0 0.0
    %439 = vmatpush.msra.mxu0 0.0
    %440 = vmatpush.msra.mxu0 0.0
    %441 = vmatpush.msra.mxu0 0.0
    %442 = vmatpush.msra.mxu0 0.0
    %443 = vmatpush.msra.mxu0 0.0
    %444 = vmatpush.msra.mxu0 0.0
    %445 = vmatpush.msra.mxu0 0.0
    %446 = vmatpush.msra.mxu0 0.0
    %447 = vmatpush.msra.mxu0 %v21
    %448 = vmatpush.msra.mxu0 %v20
    %449 = vmatpush.msra.mxu0 %v19
    %450 = vmatpush.msra.mxu0 %v18
    %451 = vmatmul.f32.gmra.mxu0 %v433
    %v452 = vpop.f32.mrf.mxu0
    %v453 = vadd.f32 0.0, %v452
    %454 = vdwg.mxu0
    %v455 = vadd.f32 %v430, %v453
    %v456 = vxor.u32 %v455, 2147483648
    %v457 = vmul.f32 %v456, 1.442695
    %v458 = vpow.pop %v457
    %v459 = vadd.f32 %v458, 1.0
    %v460 = vrcp.pop %v459
    %v461 = vmul.f32 %v459, %v460
    %v462 = vsub.f32 1.0, %v461
    %v463 = vmul.f32 %v460, %v462
    %v464 = vadd.f32 %v460, %v463
    %vm465 = vweird.f32 %v459
    %vm466 = vweird.f32 %v460
    %vm467 = vmor %vm465, %vm466
    %v468 = vsel %vm467, %v460, %v464
    %v469 = vand.u32 2147483647, %v459
    %vm470 = vcmp.eq.f32.partialorder %v469, 8.507059e+37
    %v471 = vand.u32 %v459, 2147483648
    %v472 = vor.u32 1.1754944e-38, %v471
    %v473 = vsel %vm470, %v472, %v468
    %v474 = vmul.f32 1.0, %v473
    %v475 = vtanh.pop %v455
    %v476 = vld [vmem:[#allocation3] sm:$0x3]
    %478 = vrot.lane.b32.xlu0 %v476, 32
    %v479 = vpop.permute.xlu0 %478
    %v481 = vmul.f32 %v474, %v479
    %483 = vrot.lane.b32.xlu0 %v475, 64
    %v484 = vpop.permute.xlu0 %483
    %v486 = vmul.f32 %v474, %v484
    %488 = vrot.lane.b32.xlu0 %v486, 32
    %v489 = vpop.permute.xlu0 %488
    %v491 = vadd.f32 %v481, %v489
    %v492 = vtanh.pop %v491
    %494 = vrot.lane.b32.xlu0 %v492, 64
    %v495 = vpop.permute.xlu0 %494
    %v497 = vmul.f32 %v474, %v495
    %499 = vrot.lane.b32.xlu0 %v491, 96
    %v500 = vpop.permute.xlu0 %499
    %502 = vst.msk [vmem:[#allocation3] sm:$0x3] %vm22, %v500
    %504 = vrot.lane.b32.xlu0 %v497, 32
    %v505 = vpop.permute.xlu0 %504
    %507 = vst.msk [vmem:[#allocation2] sm:$0x3] %vm22, %v505
    %s508 = scalar_lea.vmem [#allocation4], 10
    %509 = vst.msk [vmem:[%s508] sm:$0x3] %vm22, %v505
    %s510 = scalar_lea.vmem %s0, 12
    %v511 = vld [vmem:[%s510] sm:$0x3]
    %v512 = vld [vmem:[#allocation2] sm:$0x3]
    %v514 = vsel %vm27, %v512, 0
    %516 = vmatpush.msra.mxu0 0.0
    %517 = vmatpush.msra.mxu0 0.0
    %518 = vmatpush.msra.mxu0 0.0
    %519 = vmatpush.msra.mxu0 0.0
    %520 = vmatpush.msra.mxu0 0.0
    %521 = vmatpush.msra.mxu0 0.0
    %522 = vmatpush.msra.mxu0 0.0
    %523 = vmatpush.msra.mxu0 0.0
    %524 = vmatpush.msra.mxu0 0.0
    %525 = vmatpush.msra.mxu0 0.0
    %526 = vmatpush.msra.mxu0 0.0
    %527 = vmatpush.msra.mxu0 0.0
    %528 = vmatpush.msra.mxu0 %v21
    %529 = vmatpush.msra.mxu0 %v20
    %530 = vmatpush.msra.mxu0 %v19
    %531 = vmatpush.msra.mxu0 %v18
    %532 = vmatmul.f32.gmra.mxu0 %v514
    %v533 = vpop.f32.mrf.mxu0
    %v534 = vadd.f32 0.0, %v533
    %535 = vdwg.mxu0
    %v536 = vadd.f32 %v511, %v534
    %v537 = vxor.u32 %v536, 2147483648
    %v538 = vmul.f32 %v537, 1.442695
    %v539 = vpow.pop %v538
    %v540 = vadd.f32 %v539, 1.0
    %v541 = vrcp.pop %v540
    %v542 = vmul.f32 %v540, %v541
    %v543 = vsub.f32 1.0, %v542
    %v544 = vmul.f32 %v541, %v543
    %v545 = vadd.f32 %v541, %v544
    %vm546 = vweird.f32 %v540
    %vm547 = vweird.f32 %v541
    %vm548 = vmor %vm546, %vm547
    %v549 = vsel %vm548, %v541, %v545
    %v550 = vand.u32 2147483647, %v540
    %vm551 = vcmp.eq.f32.partialorder %v550, 8.507059e+37
    %v552 = vand.u32 %v540, 2147483648
    %v553 = vor.u32 1.1754944e-38, %v552
    %v554 = vsel %vm551, %v553, %v549
    %v555 = vmul.f32 1.0, %v554
    %v556 = vtanh.pop %v536
    %v557 = vld [vmem:[#allocation3] sm:$0x3]
    %559 = vrot.lane.b32.xlu0 %v557, 32
    %v560 = vpop.permute.xlu0 %559
    %v562 = vmul.f32 %v555, %v560
    %564 = vrot.lane.b32.xlu0 %v556, 64
    %v565 = vpop.permute.xlu0 %564
    %v567 = vmul.f32 %v555, %v565
    %569 = vrot.lane.b32.xlu0 %v567, 32
    %v570 = vpop.permute.xlu0 %569
    %v572 = vadd.f32 %v562, %v570
    %v573 = vtanh.pop %v572
    %575 = vrot.lane.b32.xlu0 %v573, 64
    %v576 = vpop.permute.xlu0 %575
    %v578 = vmul.f32 %v555, %v576
    %580 = vrot.lane.b32.xlu0 %v572, 96
    %v581 = vpop.permute.xlu0 %580
    %583 = vst.msk [vmem:[#allocation3] sm:$0x3] %vm22, %v581
    %585 = vrot.lane.b32.xlu0 %v578, 32
    %v586 = vpop.permute.xlu0 %585
    %588 = vst.msk [vmem:[#allocation2] sm:$0x3] %vm22, %v586
    %s589 = scalar_lea.vmem [#allocation4], 12
    %590 = vst.msk [vmem:[%s589] sm:$0x3] %vm22, %v586
    %s591 = scalar_lea.vmem %s0, 14
    %v592 = vld [vmem:[%s591] sm:$0x3]
    %v593 = vld [vmem:[#allocation2] sm:$0x3]
    %v595 = vsel %vm27, %v593, 0
    %597 = vmatpush.msra.mxu0 0.0
    %598 = vmatpush.msra.mxu0 0.0
    %599 = vmatpush.msra.mxu0 0.0
    %600 = vmatpush.msra.mxu0 0.0
    %601 = vmatpush.msra.mxu0 0.0
    %602 = vmatpush.msra.mxu0 0.0
    %603 = vmatpush.msra.mxu0 0.0
    %604 = vmatpush.msra.mxu0 0.0
    %605 = vmatpush.msra.mxu0 0.0
    %606 = vmatpush.msra.mxu0 0.0
    %607 = vmatpush.msra.mxu0 0.0
    %608 = vmatpush.msra.mxu0 0.0
    %609 = vmatpush.msra.mxu0 %v21
    %610 = vmatpush.msra.mxu0 %v20
    %611 = vmatpush.msra.mxu0 %v19
    %612 = vmatpush.msra.mxu0 %v18
    %613 = vmatmul.f32.gmra.mxu0 %v595
    %v614 = vpop.f32.mrf.mxu0
    %v615 = vadd.f32 0.0, %v614
    %616 = vdwg.mxu0
    %v617 = vadd.f32 %v592, %v615
    %v618 = vxor.u32 %v617, 2147483648
    %v619 = vmul.f32 %v618, 1.442695
    %v620 = vpow.pop %v619
    %v621 = vadd.f32 %v620, 1.0
    %v622 = vrcp.pop %v621
    %v623 = vmul.f32 %v621, %v622
    %v624 = vsub.f32 1.0, %v623
    %v625 = vmul.f32 %v622, %v624
    %v626 = vadd.f32 %v622, %v625
    %vm627 = vweird.f32 %v621
    %vm628 = vweird.f32 %v622
    %vm629 = vmor %vm627, %vm628
    %v630 = vsel %vm629, %v622, %v626
    %v631 = vand.u32 2147483647, %v621
    %vm632 = vcmp.eq.f32.partialorder %v631, 8.507059e+37
    %v633 = vand.u32 %v621, 2147483648
    %v634 = vor.u32 1.1754944e-38, %v633
    %v635 = vsel %vm632, %v634, %v630
    %v636 = vmul.f32 1.0, %v635
    %v637 = vtanh.pop %v617
    %v638 = vld [vmem:[#allocation3] sm:$0x3]
    %640 = vrot.lane.b32.xlu0 %v638, 32
    %v641 = vpop.permute.xlu0 %640
    %v643 = vmul.f32 %v636, %v641
    %645 = vrot.lane.b32.xlu0 %v637, 64
    %v646 = vpop.permute.xlu0 %645
    %v648 = vmul.f32 %v636, %v646
    %650 = vrot.lane.b32.xlu0 %v648, 32
    %v651 = vpop.permute.xlu0 %650
    %v653 = vadd.f32 %v643, %v651
    %v654 = vtanh.pop %v653
    %656 = vrot.lane.b32.xlu0 %v654, 64
    %v657 = vpop.permute.xlu0 %656
    %v659 = vmul.f32 %v636, %v657
    %661 = vrot.lane.b32.xlu0 %v653, 96
    %v662 = vpop.permute.xlu0 %661
    %664 = vst.msk [vmem:[#allocation3] sm:$0x3] %vm22, %v662
    %666 = vrot.lane.b32.xlu0 %v659, 32
    %v667 = vpop.permute.xlu0 %666
    %669 = vst.msk [vmem:[#allocation2] sm:$0x3] %vm22, %v667
    %s670 = scalar_lea.vmem [#allocation4], 14
    %671 = vst.msk [vmem:[%s670] sm:$0x3] %vm22, %v667
    %v672 = vld [vmem:[%s2] sm:$0xff]
    %v673 = vld [vmem:[%s2 + $0x8] sm:$0xff]
    %v674 = vld [vmem:[%s2 + $0x10] sm:$0xff]
    %v675 = vld [vmem:[%s2 + $0x18] sm:$0xff]
    %v676 = vld [vmem:[%s3] sm:$0x1]
    %v678 = vperm.slane %v676, 0
    %v680 = vld [vmem:[#allocation4] sm:$0x3]
    %v682 = vsel %vm27, %v680, 0
    %684 = vmatpush.msra.mxu0 0.0
    %685 = vmatpush.msra.mxu0 0.0
    %686 = vmatpush.msra.mxu0 0.0
    %687 = vmatpush.msra.mxu0 0.0
    %688 = vmatpush.msra.mxu0 0.0
    %689 = vmatpush.msra.mxu0 0.0
    %690 = vmatpush.msra.mxu0 0.0
    %691 = vmatpush.msra.mxu0 0.0
    %692 = vmatpush.msra.mxu0 0.0
    %693 = vmatpush.msra.mxu0 0.0
    %694 = vmatpush.msra.mxu0 0.0
    %695 = vmatpush.msra.mxu0 0.0
    %696 = vmatpush.msra.mxu0 %v675
    %697 = vmatpush.msra.mxu0 %v674
    %698 = vmatpush.msra.mxu0 %v673
    %699 = vmatpush.msra.mxu0 %v672
    %700 = vmatmul.f32.gmra.mxu0 %v682
    %v701 = vpop.f32.mrf.mxu0
    %v702 = vadd.f32 %v678, %v701
    %703 = vdwg.mxu0
    %v704 = vxor.u32 %v702, 2147483648
    %v705 = vmul.f32 %v704, 1.442695
    %v706 = vpow.pop %v705
    %v707 = vadd.f32 %v706, 1.0
    %v708 = vrcp.pop %v707
    %v709 = vmul.f32 %v707, %v708
    %v710 = vsub.f32 1.0, %v709
    %v711 = vmul.f32 %v708, %v710
    %v712 = vadd.f32 %v708, %v711
    %vm713 = vweird.f32 %v707
    %vm714 = vweird.f32 %v708
    %vm715 = vmor %vm713, %vm714
    %v716 = vsel %vm715, %v708, %v712
    %v717 = vand.u32 2147483647, %v707
    %vm718 = vcmp.eq.f32.partialorder %v717, 8.507059e+37
    %v719 = vand.u32 %v707, 2147483648
    %v720 = vor.u32 1.1754944e-38, %v719
    %v721 = vsel %vm718, %v720, %v716
    %v722 = vmul.f32 1.0, %v721
    %vm723 = vcmask 58368
    %724 = vst.msk [vmem:[#allocation5] sm:$0x3] %vm723, %v722
    %v725 = vld [vmem:[%s184] sm:$0x3]
    %v727 = vsel %vm27, %v725, 0
    %729 = vmatpush.msra.mxu0 0.0
    %730 = vmatpush.msra.mxu0 0.0
    %731 = vmatpush.msra.mxu0 0.0
    %732 = vmatpush.msra.mxu0 0.0
    %733 = vmatpush.msra.mxu0 0.0
    %734 = vmatpush.msra.mxu0 0.0
    %735 = vmatpush.msra.mxu0 0.0
    %736 = vmatpush.msra.mxu0 0.0
    %737 = vmatpush.msra.mxu0 0.0
    %738 = vmatpush.msra.mxu0 0.0
    %739 = vmatpush.msra.mxu0 0.0
    %740 = vmatpush.msra.mxu0 0.0
    %741 = vmatpush.msra.mxu0 %v675
    %742 = vmatpush.msra.mxu0 %v674
    %743 = vmatpush.msra.mxu0 %v673
    %744 = vmatpush.msra.mxu0 %v672
    %745 = vmatmul.f32.gmra.mxu0 %v727
    %v746 = vpop.f32.mrf.mxu0
    %v747 = vadd.f32 %v678, %v746
    %748 = vdwg.mxu0
    %v749 = vxor.u32 %v747, 2147483648
    %v750 = vmul.f32 %v749, 1.442695
    %v751 = vpow.pop %v750
    %v752 = vadd.f32 %v751, 1.0
    %v753 = vrcp.pop %v752
    %v754 = vmul.f32 %v752, %v753
    %v755 = vsub.f32 1.0, %v754
    %v756 = vmul.f32 %v753, %v755
    %v757 = vadd.f32 %v753, %v756
    %vm758 = vweird.f32 %v752
    %vm759 = vweird.f32 %v753
    %vm760 = vmor %vm758, %vm759
    %v761 = vsel %vm760, %v753, %v757
    %v762 = vand.u32 2147483647, %v752
    %vm763 = vcmp.eq.f32.partialorder %v762, 8.507059e+37
    %v764 = vand.u32 %v752, 2147483648
    %v765 = vor.u32 1.1754944e-38, %v764
    %v766 = vsel %vm763, %v765, %v761
    %v767 = vmul.f32 1.0, %v766
    %s768 = scalar_lea.vmem [#allocation5], 2
    %769 = vst.msk [vmem:[%s768] sm:$0x3] %vm723, %v767
    %v770 = vld [vmem:[%s265] sm:$0x3]
    %v772 = vsel %vm27, %v770, 0
    %774 = vmatpush.msra.mxu0 0.0
    %775 = vmatpush.msra.mxu0 0.0
    %776 = vmatpush.msra.mxu0 0.0
    %777 = vmatpush.msra.mxu0 0.0
    %778 = vmatpush.msra.mxu0 0.0
    %779 = vmatpush.msra.mxu0 0.0
    %780 = vmatpush.msra.mxu0 0.0
    %781 = vmatpush.msra.mxu0 0.0
    %782 = vmatpush.msra.mxu0 0.0
    %783 = vmatpush.msra.mxu0 0.0
    %784 = vmatpush.msra.mxu0 0.0
    %785 = vmatpush.msra.mxu0 0.0
    %786 = vmatpush.msra.mxu0 %v675
    %787 = vmatpush.msra.mxu0 %v674
    %788 = vmatpush.msra.mxu0 %v673
    %789 = vmatpush.msra.mxu0 %v672
    %790 = vmatmul.f32.gmra.mxu0 %v772
    %v791 = vpop.f32.mrf.mxu0
    %v792 = vadd.f32 %v678, %v791
    %793 = vdwg.mxu0
    %v794 = vxor.u32 %v792, 2147483648
    %v795 = vmul.f32 %v794, 1.442695
    %v796 = vpow.pop %v795
    %v797 = vadd.f32 %v796, 1.0
    %v798 = vrcp.pop %v797
    %v799 = vmul.f32 %v797, %v798
    %v800 = vsub.f32 1.0, %v799
    %v801 = vmul.f32 %v798, %v800
    %v802 = vadd.f32 %v798, %v801
    %vm803 = vweird.f32 %v797
    %vm804 = vweird.f32 %v798
    %vm805 = vmor %vm803, %vm804
    %v806 = vsel %vm805, %v798, %v802
    %v807 = vand.u32 2147483647, %v797
    %vm808 = vcmp.eq.f32.partialorder %v807, 8.507059e+37
    %v809 = vand.u32 %v797, 2147483648
    %v810 = vor.u32 1.1754944e-38, %v809
    %v811 = vsel %vm808, %v810, %v806
    %v812 = vmul.f32 1.0, %v811
    %s813 = scalar_lea.vmem [#allocation5], 4
    %814 = vst.msk [vmem:[%s813] sm:$0x3] %vm723, %v812
    %v815 = vld [vmem:[%s346] sm:$0x3]
    %v817 = vsel %vm27, %v815, 0
    %819 = vmatpush.msra.mxu0 0.0
    %820 = vmatpush.msra.mxu0 0.0
    %821 = vmatpush.msra.mxu0 0.0
    %822 = vmatpush.msra.mxu0 0.0
    %823 = vmatpush.msra.mxu0 0.0
    %824 = vmatpush.msra.mxu0 0.0
    %825 = vmatpush.msra.mxu0 0.0
    %826 = vmatpush.msra.mxu0 0.0
    %827 = vmatpush.msra.mxu0 0.0
    %828 = vmatpush.msra.mxu0 0.0
    %829 = vmatpush.msra.mxu0 0.0
    %830 = vmatpush.msra.mxu0 0.0
    %831 = vmatpush.msra.mxu0 %v675
    %832 = vmatpush.msra.mxu0 %v674
    %833 = vmatpush.msra.mxu0 %v673
    %834 = vmatpush.msra.mxu0 %v672
    %835 = vmatmul.f32.gmra.mxu0 %v817
    %v836 = vpop.f32.mrf.mxu0
    %v837 = vadd.f32 %v678, %v836
    %838 = vdwg.mxu0
    %v839 = vxor.u32 %v837, 2147483648
    %v840 = vmul.f32 %v839, 1.442695
    %v841 = vpow.pop %v840
    %v842 = vadd.f32 %v841, 1.0
    %v843 = vrcp.pop %v842
    %v844 = vmul.f32 %v842, %v843
    %v845 = vsub.f32 1.0, %v844
    %v846 = vmul.f32 %v843, %v845
    %v847 = vadd.f32 %v843, %v846
    %vm848 = vweird.f32 %v842
    %vm849 = vweird.f32 %v843
    %vm850 = vmor %vm848, %vm849
    %v851 = vsel %vm850, %v843, %v847
    %v852 = vand.u32 2147483647, %v842
    %vm853 = vcmp.eq.f32.partialorder %v852, 8.507059e+37
    %v854 = vand.u32 %v842, 2147483648
    %v855 = vor.u32 1.1754944e-38, %v854
    %v856 = vsel %vm853, %v855, %v851
    %v857 = vmul.f32 1.0, %v856
    %s858 = scalar_lea.vmem [#allocation5], 6
    %859 = vst.msk [vmem:[%s858] sm:$0x3] %vm723, %v857
    %v860 = vld [vmem:[%s427] sm:$0x3]
    %v862 = vsel %vm27, %v860, 0
    %864 = vmatpush.msra.mxu0 0.0
    %865 = vmatpush.msra.mxu0 0.0
    %866 = vmatpush.msra.mxu0 0.0
    %867 = vmatpush.msra.mxu0 0.0
    %868 = vmatpush.msra.mxu0 0.0
    %869 = vmatpush.msra.mxu0 0.0
    %870 = vmatpush.msra.mxu0 0.0
    %871 = vmatpush.msra.mxu0 0.0
    %872 = vmatpush.msra.mxu0 0.0
    %873 = vmatpush.msra.mxu0 0.0
    %874 = vmatpush.msra.mxu0 0.0
    %875 = vmatpush.msra.mxu0 0.0
    %876 = vmatpush.msra.mxu0 %v675
    %877 = vmatpush.msra.mxu0 %v674
    %878 = vmatpush.msra.mxu0 %v673
    %879 = vmatpush.msra.mxu0 %v672
    %880 = vmatmul.f32.gmra.mxu0 %v862
    %v881 = vpop.f32.mrf.mxu0
    %v882 = vadd.f32 %v678, %v881
    %883 = vdwg.mxu0
    %v884 = vxor.u32 %v882, 2147483648
    %v885 = vmul.f32 %v884, 1.442695
    %v886 = vpow.pop %v885
    %v887 = vadd.f32 %v886, 1.0
    %v888 = vrcp.pop %v887
    %v889 = vmul.f32 %v887, %v888
    %v890 = vsub.f32 1.0, %v889
    %v891 = vmul.f32 %v888, %v890
    %v892 = vadd.f32 %v888, %v891
    %vm893 = vweird.f32 %v887
    %vm894 = vweird.f32 %v888
    %vm895 = vmor %vm893, %vm894
    %v896 = vsel %vm895, %v888, %v892
    %v897 = vand.u32 2147483647, %v887
    %vm898 = vcmp.eq.f32.partialorder %v897, 8.507059e+37
    %v899 = vand.u32 %v887, 2147483648
    %v900 = vor.u32 1.1754944e-38, %v899
    %v901 = vsel %vm898, %v900, %v896
    %v902 = vmul.f32 1.0, %v901
    %s903 = scalar_lea.vmem [#allocation5], 8
    %904 = vst.msk [vmem:[%s903] sm:$0x3] %vm723, %v902
    %v905 = vld [vmem:[%s508] sm:$0x3]
    %v907 = vsel %vm27, %v905, 0
    %909 = vmatpush.msra.mxu0 0.0
    %910 = vmatpush.msra.mxu0 0.0
    %911 = vmatpush.msra.mxu0 0.0
    %912 = vmatpush.msra.mxu0 0.0
    %913 = vmatpush.msra.mxu0 0.0
    %914 = vmatpush.msra.mxu0 0.0
    %915 = vmatpush.msra.mxu0 0.0
    %916 = vmatpush.msra.mxu0 0.0
    %917 = vmatpush.msra.mxu0 0.0
    %918 = vmatpush.msra.mxu0 0.0
    %919 = vmatpush.msra.mxu0 0.0
    %920 = vmatpush.msra.mxu0 0.0
    %921 = vmatpush.msra.mxu0 %v675
    %922 = vmatpush.msra.mxu0 %v674
    %923 = vmatpush.msra.mxu0 %v673
    %924 = vmatpush.msra.mxu0 %v672
    %925 = vmatmul.f32.gmra.mxu0 %v907
    %v926 = vpop.f32.mrf.mxu0
    %v927 = vadd.f32 %v678, %v926
    %928 = vdwg.mxu0
    %v929 = vxor.u32 %v927, 2147483648
    %v930 = vmul.f32 %v929, 1.442695
    %v931 = vpow.pop %v930
    %v932 = vadd.f32 %v931, 1.0
    %v933 = vrcp.pop %v932
    %v934 = vmul.f32 %v932, %v933
    %v935 = vsub.f32 1.0, %v934
    %v936 = vmul.f32 %v933, %v935
    %v937 = vadd.f32 %v933, %v936
    %vm938 = vweird.f32 %v932
    %vm939 = vweird.f32 %v933
    %vm940 = vmor %vm938, %vm939
    %v941 = vsel %vm940, %v933, %v937
    %v942 = vand.u32 2147483647, %v932
    %vm943 = vcmp.eq.f32.partialorder %v942, 8.507059e+37
    %v944 = vand.u32 %v932, 2147483648
    %v945 = vor.u32 1.1754944e-38, %v944
    %v946 = vsel %vm943, %v945, %v941
    %v947 = vmul.f32 1.0, %v946
    %s948 = scalar_lea.vmem [#allocation5], 10
    %949 = vst.msk [vmem:[%s948] sm:$0x3] %vm723, %v947
    %v950 = vld [vmem:[%s589] sm:$0x3]
    %v952 = vsel %vm27, %v950, 0
    %954 = vmatpush.msra.mxu0 0.0
    %955 = vmatpush.msra.mxu0 0.0
    %956 = vmatpush.msra.mxu0 0.0
    %957 = vmatpush.msra.mxu0 0.0
    %958 = vmatpush.msra.mxu0 0.0
    %959 = vmatpush.msra.mxu0 0.0
    %960 = vmatpush.msra.mxu0 0.0
    %961 = vmatpush.msra.mxu0 0.0
    %962 = vmatpush.msra.mxu0 0.0
    %963 = vmatpush.msra.mxu0 0.0
    %964 = vmatpush.msra.mxu0 0.0
    %965 = vmatpush.msra.mxu0 0.0
    %966 = vmatpush.msra.mxu0 %v675
    %967 = vmatpush.msra.mxu0 %v674
    %968 = vmatpush.msra.mxu0 %v673
    %969 = vmatpush.msra.mxu0 %v672
    %970 = vmatmul.f32.gmra.mxu0 %v952
    %v971 = vpop.f32.mrf.mxu0
    %v972 = vadd.f32 %v678, %v971
    %973 = vdwg.mxu0
    %v974 = vxor.u32 %v972, 2147483648
    %v975 = vmul.f32 %v974, 1.442695
    %v976 = vpow.pop %v975
    %v977 = vadd.f32 %v976, 1.0
    %v978 = vrcp.pop %v977
    %v979 = vmul.f32 %v977, %v978
    %v980 = vsub.f32 1.0, %v979
    %v981 = vmul.f32 %v978, %v980
    %v982 = vadd.f32 %v978, %v981
    %vm983 = vweird.f32 %v977
    %vm984 = vweird.f32 %v978
    %vm985 = vmor %vm983, %vm984
    %v986 = vsel %vm985, %v978, %v982
    %v987 = vand.u32 2147483647, %v977
    %vm988 = vcmp.eq.f32.partialorder %v987, 8.507059e+37
    %v989 = vand.u32 %v977, 2147483648
    %v990 = vor.u32 1.1754944e-38, %v989
    %v991 = vsel %vm988, %v990, %v986
    %v992 = vmul.f32 1.0, %v991
    %s993 = scalar_lea.vmem [#allocation5], 12
    %994 = vst.msk [vmem:[%s993] sm:$0x3] %vm723, %v992
    %v995 = vld [vmem:[%s670] sm:$0x3]
    %v997 = vsel %vm27, %v995, 0
    %999 = vmatpush.msra.mxu0 0.0
    %1000 = vmatpush.msra.mxu0 0.0
    %1001 = vmatpush.msra.mxu0 0.0
    %1002 = vmatpush.msra.mxu0 0.0
    %1003 = vmatpush.msra.mxu0 0.0
    %1004 = vmatpush.msra.mxu0 0.0
    %1005 = vmatpush.msra.mxu0 0.0
    %1006 = vmatpush.msra.mxu0 0.0
    %1007 = vmatpush.msra.mxu0 0.0
    %1008 = vmatpush.msra.mxu0 0.0
    %1009 = vmatpush.msra.mxu0 0.0
    %1010 = vmatpush.msra.mxu0 0.0
    %1011 = vmatpush.msra.mxu0 %v675
    %1012 = vmatpush.msra.mxu0 %v674
    %1013 = vmatpush.msra.mxu0 %v673
    %1014 = vmatpush.msra.mxu0 %v672
    %1015 = vmatmul.f32.gmra.mxu0 %v997
    %v1016 = vpop.f32.mrf.mxu0
    %v1017 = vadd.f32 %v678, %v1016
    %1018 = vdwg.mxu0
    %v1019 = vxor.u32 %v1017, 2147483648
    %v1020 = vmul.f32 %v1019, 1.442695
    %v1021 = vpow.pop %v1020
    %v1022 = vadd.f32 %v1021, 1.0
    %v1023 = vrcp.pop %v1022
    %v1024 = vmul.f32 %v1022, %v1023
    %v1025 = vsub.f32 1.0, %v1024
    %v1026 = vmul.f32 %v1023, %v1025
    %v1027 = vadd.f32 %v1023, %v1026
    %vm1028 = vweird.f32 %v1022
    %vm1029 = vweird.f32 %v1023
    %vm1030 = vmor %vm1028, %vm1029
    %v1031 = vsel %vm1030, %v1023, %v1027
    %v1032 = vand.u32 2147483647, %v1022
    %vm1033 = vcmp.eq.f32.partialorder %v1032, 8.507059e+37
    %v1034 = vand.u32 %v1022, 2147483648
    %v1035 = vor.u32 1.1754944e-38, %v1034
    %v1036 = vsel %vm1033, %v1035, %v1031
    %v1037 = vmul.f32 1.0, %v1036
    %s1038 = scalar_lea.vmem [#allocation5], 14
    %1039 = vst.msk [vmem:[%s1038] sm:$0x3] %vm723, %v1037
    // Predicated region
    $region18: #{lstm_forward.1} parent=1 // pred_check
      _
    $region19: #{lstm_forward.1} parent=1 // pred_check_branch
      %1041 = sbr.rel (0) target = $region21
    $region20: #{lstm_forward.1} parent=1 // pred_region
      %1043 = vsyncadd [#allocation6], 0
      %s1044 = sshll.u32 [#allocation5], 4
      %s1045 = int_to_ptr.vmem [resolvable:$true] %s1044
      %s1046 = sshll.u32 %s4, 4
      %s1047 = int_to_ptr.hbm [resolvable:$true] %s1046
      %1052 = dma.vmem_to_hbm [thread:$0]  %s1045, 256, %s1047, [#allocation6], 32, 32, 2
    $region21: #{lstm_forward.1} parent=1 // pred_fallthru
      _
    // Predicated region
    $region22: #{lstm_forward.1} parent=1 // pred_check
      _
    $region23: #{lstm_forward.1} parent=1 // pred_check_branch
      %1054 = sbr.rel (0) target = $region25
    $region24: #{lstm_forward.1} parent=1 // pred_region
      %1056 = dma.done [#allocation6], 256
    $region25: #{lstm_forward.1} parent=1 // pred_fallthru
      _
    %1057 = vsyncpa [#allocation6], 1

</llo_original>
